<compile_context>
chip_gen: v7x
topology: tpu7x:2x2x1
jax: 0.10.0
libtpu: 0.0.40
codegen_flags: <defaults>
</compile_context>

<pallas_src>
import math
import functools

import jax
import jax.numpy as jnp
import numpy as np
from jax.experimental import pallas as pl
from jax.experimental.pallas import tpu as pltpu


def _attention_kernel(x_ref, g_ref, bta_ref, wqkv_ref, bqkv_ref, w2_ref, b2_ref,
                      o_ref, *, num_heads, head_dim, block_b):
    """Fused LayerNorm + QKV + MHA + out-proj for TB batch elements.

    x_ref    : (TB, L, C)                 g_ref / bta_ref : (1, C)  f32
    wqkv_ref : (C, 3C)  bf16  [q(head-major, pre-scaled) | k | v]
    bqkv_ref : (1, 3C)  f32   (q part pre-scaled)
    w2_ref   : (C, C)   bf16  (rows ordered to match head-major o lanes)
    b2_ref   : (1, C)   f32
    o_ref    : (TB, L, C)
    """
    H, hd = num_heads, head_dim
    C = H * hd
    TB = block_b
    L = x_ref.shape[1]
    TBL = TB * L
    f32, bf16 = jnp.float32, jnp.bfloat16

    # ---- LayerNorm (eps=1e-5, biased variance, torch semantics) ------------
    x = x_ref[...].reshape(TBL, C).astype(f32)
    mean = jnp.mean(x, axis=-1, keepdims=True)
    xc = x - mean
    var = jnp.mean(xc * xc, axis=-1, keepdims=True)
    xn = (xc * jax.lax.rsqrt(var + 1e-5) * g_ref[0] + bta_ref[0]).astype(bf16)

    # ---- fused QKV projection: single lane-dense (TBL, C) @ (C, 3C) --------
    qkv = jnp.dot(xn, wqkv_ref[...], preferred_element_type=f32) + bqkv_ref[0]
    qkv = qkv.astype(bf16).reshape(TB, L, 3 * C)   # q columns already scaled

    # ---- per-head attention (static unroll over H, batched over TB) --------
    o_heads = []
    for h in range(H):
        q_h = qkv[:, :, h * hd:(h + 1) * hd]                   # (TB, L, hd)
        k_h = qkv[:, :, C + h * hd:C + (h + 1) * hd]
        v_h = qkv[:, :, 2 * C + h * hd:2 * C + (h + 1) * hd]
        # scores: contract last dims directly (no k transpose materialized)
        s = jax.lax.dot_general(q_h, k_h, (((2,), (2,)), ((0,), (0,))),
                                preferred_element_type=f32)    # (TB, L, L) f32
        s = s - jnp.max(s, axis=-1, keepdims=True)
        # bf16 exponent (~2x EUP throughput on v6e/v7x; neutral on v5e);
        # row sums kept in f32.
        p = jnp.exp(s.astype(bf16))
        denom = jnp.sum(p.astype(f32), axis=-1, keepdims=True)
        o_h = jax.lax.dot_general(p, v_h, (((2,), (1,)), ((0,), (0,))),
                                  preferred_element_type=f32)  # (TB, L, hd)
        # deferred softmax normalization on the small (L, hd) tile via EUP
        o_h = o_h * pl.reciprocal(denom, approx=True)
        o_heads.append(o_h.astype(bf16))

    # ---- fused out-projection: head accumulation inside the MXU (K = C) ----
    o_cat = jnp.concatenate(o_heads, axis=-1).reshape(TBL, C)  # lane-dense
    out = jnp.dot(o_cat, w2_ref[...], preferred_element_type=f32) + b2_ref[0]
    o_ref[...] = out.reshape(TB, L, C).astype(o_ref.dtype)


def _pick_tb(B, L, C):
    """Batch elements folded per grid step.

    Prefer >= 4 grid steps (>= 2 per TensorCore on v7x dual-TC) so the x-block
    fetch / output write-back stay hidden behind neighbouring steps' compute,
    then grow TB within a per-step activation budget (x/out double-buffered,
    fused qkv, one head's (L, L) scores, packed o) that fits every
    generation's default scoped VMEM.
    """
    per_tb = (4 * L * C * 2 * 2      # x + out blocks, double-buffered, f32
              + 4 * L * 3 * C        # fused qkv (f32 accum)
              + 4 * L * L            # one head's scores (f32)
              + 4 * L * C)           # packed o / out tile
    budget = 8 * 1024 * 1024
    max_tb = max(1, budget // per_tb)
    for min_steps in (4, 2, 1):
        cands = [tb for tb in range(1, B + 1)
                 if B % tb == 0 and tb <= max_tb and B // tb >= min_steps]
        if cands:
            return max(cands)
    return 1


def attention_forward(x_nchw, params, num_heads):
    """params = (gamma, beta, w1, b1, w2, b2) in PyTorch conventions:
       gamma/beta: (C,), w1: (3C, C), b1: (3C,), w2: (C, C), b2: (C,)."""
    gamma, beta, w1, b1, w2, b2 = params
    B, C, Hs, Ws = x_nchw.shape
    L = Hs * Ws
    H = num_heads
    hd = C // H
    scale = 1.0 / math.sqrt(hd)

    # glue: NCHW -> (B, L, C) tokens (fine at demo size; see TODO at top).
    x_tok = jnp.transpose(x_nchw, (0, 2, 3, 1)).reshape(B, L, C)

    # Pack proj1 into ONE lane-dense (C, 3C) slab ordered [q | k | v], each
    # chunk head-major (column j = h*hd + c). torch output channel of proj1 is
    # i = c*(H*3) + h*3 + kk (from rearrange 'b L (C H K) -> K b H L C').
    cc = jnp.arange(hd)[None, :]
    hh = jnp.arange(H)[:, None]
    base = cc * (H * 3) + hh * 3                       # (H, hd) -> j = h*hd + c
    perm = jnp.concatenate([(base + kk).reshape(-1) for kk in range(3)])
    w_qkv = w1[perm].T                                 # (C, 3C)
    b_qkv = b1[perm]                                   # (3C,)
    qscale = jnp.concatenate([jnp.full((C,), scale, jnp.float32),
                              jnp.ones((2 * C,), jnp.float32)])
    w_qkv = w_qkv * qscale[None, :]                    # fold softmax scale into q
    b_qkv = b_qkv * qscale

    # Pack proj2 so its rows match the kernel's head-major o lanes:
    # proj2 input channel m = c*H + h  ->  w2_packed[h*hd + c, :] = w2[:, m].
    m_idx = (cc * H + hh).reshape(-1)                  # (C,)
    w2_packed = w2.T[m_idx]                            # (C, C)

    TB = _pick_tb(B, L, C)
    kernel = functools.partial(_attention_kernel, num_heads=H, head_dim=hd,
                               block_b=TB)

    out_tok = pl.pallas_call(
        kernel,
        out_shape=jax.ShapeDtypeStruct((B, L, C), x_tok.dtype),
        grid_spec=pltpu.PrefetchScalarGridSpec(
            num_scalar_prefetch=0,
            grid=(B // TB,),
            in_specs=[
                pl.BlockSpec((TB, L, C), lambda b: (b, 0, 0)),   # x
                pl.BlockSpec((1, C), lambda b: (0, 0)),          # gamma
                pl.BlockSpec((1, C), lambda b: (0, 0)),          # beta
                pl.BlockSpec((C, 3 * C), lambda b: (0, 0)),      # fused qkv W
                pl.BlockSpec((1, 3 * C), lambda b: (0, 0)),      # fused qkv b
                pl.BlockSpec((C, C), lambda b: (0, 0)),          # packed proj2 W
                pl.BlockSpec((1, C), lambda b: (0, 0)),          # proj2 b
            ],
            out_specs=pl.BlockSpec((TB, L, C), lambda b: (b, 0, 0)),
        ),
        compiler_params=pltpu.CompilerParams(
            dimension_semantics=("parallel",),
            vmem_limit_bytes=32 * 1024 * 1024),
    )(x_tok, gamma[None, :], beta[None, :],
      w_qkv.astype(jnp.bfloat16), b_qkv[None, :],
      w2_packed.astype(jnp.bfloat16), b2[None, :])

    # glue: (B, L, C) -> NCHW
    return jnp.transpose(out_tok.reshape(B, Hs, Ws, C), (0, 3, 1, 2))


def attention_reference(x_nchw, params, num_heads):
    """Pure-JAX (f32) replica of the PyTorch forward (for verification)."""
    gamma, beta, w1, b1, w2, b2 = params
    B, C, Hs, Ws = x_nchw.shape
    hd = C // num_heads
    L = Hs * Ws
    x = jnp.transpose(x_nchw, (0, 2, 3, 1)).reshape(B, L, C)
    mean = x.mean(-1, keepdims=True)
    var = ((x - mean) ** 2).mean(-1, keepdims=True)
    x = (x - mean) / jnp.sqrt(var + 1e-5) * gamma + beta
    y = x @ w1.T + b1                                   # (B, L, 3C)
    y = y.reshape(B, L, hd, num_heads, 3)               # b L (C H K)
    y = jnp.transpose(y, (4, 0, 3, 1, 2))               # K b H L C
    q, k, v = y[0], y[1], y[2]
    s = jnp.einsum('bhlc,bhmc->bhlm', q, k) / math.sqrt(hd)
    p = jax.nn.softmax(s, axis=-1)
    o = jnp.einsum('bhlm,bhmc->bhlc', p, v)             # b H L C
    o = jnp.transpose(o, (0, 2, 3, 1)).reshape(B, Hs, Ws, hd * num_heads)
    out = o @ w2.T + b2
    return jnp.transpose(out, (0, 3, 1, 2))


if __name__ == "__main__":
    # Small deterministic config: embed_dim=128, 4 heads, 8x8 spatial, batch=4
    # (C = 128 keeps the output lane-dense; TB = 1 -> 4 parallel grid steps,
    # >= 2 per TensorCore on v7x dual-TC).
    B, C, Hs, Ws = 4, 128, 8, 8
    num_heads = 4
    key = jax.random.PRNGKey(0)
    kx, kg, kb, kw1, kb1, kw2, kb2 = jax.random.split(key, 7)

    x = jax.random.normal(kx, (B, C, Hs, Ws), dtype=jnp.float32)

    bound = 1.0 / math.sqrt(C)
    gamma = 1.0 + 0.1 * jax.random.normal(kg, (C,), dtype=jnp.float32)
    beta = 0.1 * jax.random.normal(kb, (C,), dtype=jnp.float32)
    w1 = jax.random.uniform(kw1, (3 * C, C), minval=-bound, maxval=bound,
                            dtype=jnp.float32)
    b1 = jax.random.uniform(kb1, (3 * C,), minval=-bound, maxval=bound,
                            dtype=jnp.float32)
    w2 = jax.random.uniform(kw2, (C, C), minval=-bound, maxval=bound,
                            dtype=jnp.float32)
    b2 = jax.random.uniform(kb2, (C,), minval=-bound, maxval=bound,
                            dtype=jnp.float32)
    params = (gamma, beta, w1, b1, w2, b2)

    out = attention_forward(x, params, num_heads)
    out = jax.block_until_ready(out)

    ref = attention_reference(x, params, num_heads)
    assert out.shape == (B, C, Hs, Ws), out.shape
    # bf16 MXU operands + bf16 exp + approx reciprocal -> relaxed tolerance
    # vs the f32 reference (documented correctness concession).
    np.testing.assert_allclose(np.asarray(out), np.asarray(ref),
                               atol=2e-2, rtol=2e-2)

    print("KERNEL_OK")
</pallas_src>

<mosaic_0001>
module attributes {stable_mosaic.version = 11 : i64} {
  func.func @_attention_kernel(%arg0: i32, %arg1: memref<1x64x128xf32, #tpu.memory_space<vmem>>, %arg2: memref<1x128xf32, #tpu.memory_space<vmem>>, %arg3: memref<1x128xf32, #tpu.memory_space<vmem>>, %arg4: memref<128x384xbf16, #tpu.memory_space<vmem>>, %arg5: memref<1x384xf32, #tpu.memory_space<vmem>>, %arg6: memref<128x128xbf16, #tpu.memory_space<vmem>>, %arg7: memref<1x128xf32, #tpu.memory_space<vmem>>, %arg8: memref<1x64x128xf32, #tpu.memory_space<vmem>>) attributes {dimension_semantics = [#tpu.dimension_semantics<parallel>], iteration_bounds = array<i64: 4>, scalar_prefetch = 0 : i64, scratch_operands = 0 : i64, tpu.core_type = #tpu.core_type<tc>, window_params = [{transform_indices = @transform_0, window_bounds = array<i64: 1, 64, 128>}, {pipeline_mode = #tpu.pipeline_mode<synchronous>, transform_indices = @transform_1, window_bounds = array<i64: 1, 128>}, {pipeline_mode = #tpu.pipeline_mode<synchronous>, transform_indices = @transform_2, window_bounds = array<i64: 1, 128>}, {pipeline_mode = #tpu.pipeline_mode<synchronous>, transform_indices = @transform_3, window_bounds = array<i64: 128, 384>}, {pipeline_mode = #tpu.pipeline_mode<synchronous>, transform_indices = @transform_4, window_bounds = array<i64: 1, 384>}, {pipeline_mode = #tpu.pipeline_mode<synchronous>, transform_indices = @transform_5, window_bounds = array<i64: 128, 128>}, {pipeline_mode = #tpu.pipeline_mode<synchronous>, transform_indices = @transform_6, window_bounds = array<i64: 1, 128>}, {transform_indices = @transform_7, window_bounds = array<i64: 1, 64, 128>}]} {
    %c0 = arith.constant 0 : index
    %c0_0 = arith.constant 0 : index
    %c0_1 = arith.constant 0 : index
    %0 = vector.load %arg1[%c0, %c0_0, %c0_1] : memref<1x64x128xf32, #tpu.memory_space<vmem>>, vector<1x64x128xf32>
    %1 = vector.shape_cast %0 : vector<1x64x128xf32> to vector<64x128xf32>
    %cst = arith.constant dense<0.000000e+00> : vector<64xf32>
    %2 = vector.multi_reduction <add>, %1, %cst [1] : vector<64x128xf32> to vector<64xf32>
    %3 = vector.shape_cast %2 : vector<64xf32> to vector<64x1xf32>
    %cst_2 = arith.constant 1.280000e+02 : f32
    %4 = vector.broadcast %cst_2 : f32 to vector<64x1xf32>
    %5 = arith.divf %3, %4 : vector<64x1xf32>
    %6 = vector.broadcast %5 : vector<64x1xf32> to vector<64x128xf32>
    %7 = arith.subf %1, %6 : vector<64x128xf32>
    %8 = arith.mulf %7, %7 : vector<64x128xf32>
    %cst_3 = arith.constant dense<0.000000e+00> : vector<64xf32>
    %9 = vector.multi_reduction <add>, %8, %cst_3 [1] : vector<64x128xf32> to vector<64xf32>
    %10 = vector.shape_cast %9 : vector<64xf32> to vector<64x1xf32>
    %cst_4 = arith.constant 1.280000e+02 : f32
    %11 = vector.broadcast %cst_4 : f32 to vector<64x1xf32>
    %12 = arith.divf %10, %11 : vector<64x1xf32>
    %cst_5 = arith.constant 9.99999974E-6 : f32
    %13 = vector.broadcast %cst_5 : f32 to vector<64x1xf32>
    %14 = arith.addf %12, %13 : vector<64x1xf32>
    %15 = math.rsqrt %14 : vector<64x1xf32>
    %16 = vector.broadcast %15 : vector<64x1xf32> to vector<64x128xf32>
    %17 = arith.mulf %7, %16 : vector<64x128xf32>
    %c0_6 = arith.constant 0 : index
    %c0_7 = arith.constant 0 : index
    %18 = vector.load %arg2[%c0_6, %c0_7] : memref<1x128xf32, #tpu.memory_space<vmem>>, vector<1x128xf32>
    %19 = vector.shape_cast %18 : vector<1x128xf32> to vector<128xf32>
    %20 = vector.shape_cast %19 : vector<128xf32> to vector<1x128xf32>
    %21 = vector.broadcast %20 : vector<1x128xf32> to vector<64x128xf32>
    %22 = arith.mulf %17, %21 : vector<64x128xf32>
    %c0_8 = arith.constant 0 : index
    %c0_9 = arith.constant 0 : index
    %23 = vector.load %arg3[%c0_8, %c0_9] : memref<1x128xf32, #tpu.memory_space<vmem>>, vector<1x128xf32>
    %24 = vector.shape_cast %23 : vector<1x128xf32> to vector<128xf32>
    %25 = vector.shape_cast %24 : vector<128xf32> to vector<1x128xf32>
    %26 = vector.broadcast %25 : vector<1x128xf32> to vector<64x128xf32>
    %27 = arith.addf %22, %26 : vector<64x128xf32>
    %28 = arith.truncf %27 : vector<64x128xf32> to vector<64x128xbf16>
    %c0_10 = arith.constant 0 : index
    %c0_11 = arith.constant 0 : index
    %29 = vector.load %arg4[%c0_10, %c0_11] : memref<128x384xbf16, #tpu.memory_space<vmem>>, vector<128x384xbf16>
    %cst_12 = arith.constant dense<0.000000e+00> : vector<64x384xf32>
    %30 = tpu.matmul %28, %29, %cst_12 {dimension_numbers = #tpu.dot_dimension_numbers<[1], [0], [0], [1], [0, 0, 1, 1], [], []>} : vector<64x128xbf16>, vector<128x384xbf16>, vector<64x384xf32> -> vector<64x384xf32>
    %c0_13 = arith.constant 0 : index
    %c0_14 = arith.constant 0 : index
    %31 = vector.load %arg5[%c0_13, %c0_14] : memref<1x384xf32, #tpu.memory_space<vmem>>, vector<1x384xf32>
    %32 = vector.shape_cast %31 : vector<1x384xf32> to vector<384xf32>
    %33 = vector.shape_cast %32 : vector<384xf32> to vector<1x384xf32>
    %34 = vector.broadcast %33 : vector<1x384xf32> to vector<64x384xf32>
    %35 = arith.addf %30, %34 : vector<64x384xf32>
    %36 = arith.truncf %35 : vector<64x384xf32> to vector<64x384xbf16>
    %37 = vector.shape_cast %36 : vector<64x384xbf16> to vector<1x64x384xbf16>
    %38 = vector.extract_strided_slice %37 {offsets = [0, 0, 0], sizes = [1, 64, 32], strides = [1, 1, 1]} : vector<1x64x384xbf16> to vector<1x64x32xbf16>
    %39 = vector.extract_strided_slice %37 {offsets = [0, 0, 128], sizes = [1, 64, 32], strides = [1, 1, 1]} : vector<1x64x384xbf16> to vector<1x64x32xbf16>
    %40 = vector.extract_strided_slice %37 {offsets = [0, 0, 256], sizes = [1, 64, 32], strides = [1, 1, 1]} : vector<1x64x384xbf16> to vector<1x64x32xbf16>
    %cst_15 = arith.constant dense<0.000000e+00> : vector<1x64x64xf32>
    %41 = tpu.matmul %38, %39, %cst_15 {dimension_numbers = #tpu.dot_dimension_numbers<[2], [2], [1], [1], [0, 0, 0, 1, 1, 1], [0], [0]>} : vector<1x64x32xbf16>, vector<1x64x32xbf16>, vector<1x64x64xf32> -> vector<1x64x64xf32>
    %cst_16 = arith.constant dense<0xFF800000> : vector<1x64xf32>
    %42 = vector.multi_reduction <maximumf>, %41, %cst_16 [2] : vector<1x64x64xf32> to vector<1x64xf32>
    %43 = vector.shape_cast %42 : vector<1x64xf32> to vector<1x64x1xf32>
    %44 = vector.broadcast %43 : vector<1x64x1xf32> to vector<1x64x64xf32>
    %45 = arith.subf %41, %44 : vector<1x64x64xf32>
    %46 = arith.truncf %45 : vector<1x64x64xf32> to vector<1x64x64xbf16>
    %47 = math.exp %46 : vector<1x64x64xbf16>
    %48 = arith.extf %47 : vector<1x64x64xbf16> to vector<1x64x64xf32>
    %cst_17 = arith.constant dense<0.000000e+00> : vector<1x64xf32>
    %49 = vector.multi_reduction <add>, %48, %cst_17 [2] : vector<1x64x64xf32> to vector<1x64xf32>
    %50 = vector.shape_cast %49 : vector<1x64xf32> to vector<1x64x1xf32>
    %cst_18 = arith.constant dense<0.000000e+00> : vector<1x64x32xf32>
    %51 = tpu.matmul %47, %40, %cst_18 {dimension_numbers = #tpu.dot_dimension_numbers<[2], [1], [1], [2], [0, 0, 0, 1, 1, 2], [0], [0]>} : vector<1x64x64xbf16>, vector<1x64x32xbf16>, vector<1x64x32xf32> -> vector<1x64x32xf32>
    %52 = tpu.reciprocal %50 {approx = true} : vector<1x64x1xf32> -> vector<1x64x1xf32>
    %53 = vector.broadcast %52 : vector<1x64x1xf32> to vector<1x64x32xf32>
    %54 = arith.mulf %51, %53 : vector<1x64x32xf32>
    %55 = arith.truncf %54 : vector<1x64x32xf32> to vector<1x64x32xbf16>
    %56 = vector.extract_strided_slice %37 {offsets = [0, 0, 32], sizes = [1, 64, 32], strides = [1, 1, 1]} : vector<1x64x384xbf16> to vector<1x64x32xbf16>
    %57 = vector.extract_strided_slice %37 {offsets = [0, 0, 160], sizes = [1, 64, 32], strides = [1, 1, 1]} : vector<1x64x384xbf16> to vector<1x64x32xbf16>
    %58 = vector.extract_strided_slice %37 {offsets = [0, 0, 288], sizes = [1, 64, 32], strides = [1, 1, 1]} : vector<1x64x384xbf16> to vector<1x64x32xbf16>
    %cst_19 = arith.constant dense<0.000000e+00> : vector<1x64x64xf32>
    %59 = tpu.matmul %56, %57, %cst_19 {dimension_numbers = #tpu.dot_dimension_numbers<[2], [2], [1], [1], [0, 0, 0, 1, 1, 1], [0], [0]>} : vector<1x64x32xbf16>, vector<1x64x32xbf16>, vector<1x64x64xf32> -> vector<1x64x64xf32>
    %cst_20 = arith.constant dense<0xFF800000> : vector<1x64xf32>
    %60 = vector.multi_reduction <maximumf>, %59, %cst_20 [2] : vector<1x64x64xf32> to vector<1x64xf32>
    %61 = vector.shape_cast %60 : vector<1x64xf32> to vector<1x64x1xf32>
    %62 = vector.broadcast %61 : vector<1x64x1xf32> to vector<1x64x64xf32>
    %63 = arith.subf %59, %62 : vector<1x64x64xf32>
    %64 = arith.truncf %63 : vector<1x64x64xf32> to vector<1x64x64xbf16>
    %65 = math.exp %64 : vector<1x64x64xbf16>
    %66 = arith.extf %65 : vector<1x64x64xbf16> to vector<1x64x64xf32>
    %cst_21 = arith.constant dense<0.000000e+00> : vector<1x64xf32>
    %67 = vector.multi_reduction <add>, %66, %cst_21 [2] : vector<1x64x64xf32> to vector<1x64xf32>
    %68 = vector.shape_cast %67 : vector<1x64xf32> to vector<1x64x1xf32>
    %cst_22 = arith.constant dense<0.000000e+00> : vector<1x64x32xf32>
    %69 = tpu.matmul %65, %58, %cst_22 {dimension_numbers = #tpu.dot_dimension_numbers<[2], [1], [1], [2], [0, 0, 0, 1, 1, 2], [0], [0]>} : vector<1x64x64xbf16>, vector<1x64x32xbf16>, vector<1x64x32xf32> -> vector<1x64x32xf32>
    %70 = tpu.reciprocal %68 {approx = true} : vector<1x64x1xf32> -> vector<1x64x1xf32>
    %71 = vector.broadcast %70 : vector<1x64x1xf32> to vector<1x64x32xf32>
    %72 = arith.mulf %69, %71 : vector<1x64x32xf32>
    %73 = arith.truncf %72 : vector<1x64x32xf32> to vector<1x64x32xbf16>
    %74 = vector.extract_strided_slice %37 {offsets = [0, 0, 64], sizes = [1, 64, 32], strides = [1, 1, 1]} : vector<1x64x384xbf16> to vector<1x64x32xbf16>
    %75 = vector.extract_strided_slice %37 {offsets = [0, 0, 192], sizes = [1, 64, 32], strides = [1, 1, 1]} : vector<1x64x384xbf16> to vector<1x64x32xbf16>
    %76 = vector.extract_strided_slice %37 {offsets = [0, 0, 320], sizes = [1, 64, 32], strides = [1, 1, 1]} : vector<1x64x384xbf16> to vector<1x64x32xbf16>
    %cst_23 = arith.constant dense<0.000000e+00> : vector<1x64x64xf32>
    %77 = tpu.matmul %74, %75, %cst_23 {dimension_numbers = #tpu.dot_dimension_numbers<[2], [2], [1], [1], [0, 0, 0, 1, 1, 1], [0], [0]>} : vector<1x64x32xbf16>, vector<1x64x32xbf16>, vector<1x64x64xf32> -> vector<1x64x64xf32>
    %cst_24 = arith.constant dense<0xFF800000> : vector<1x64xf32>
    %78 = vector.multi_reduction <maximumf>, %77, %cst_24 [2] : vector<1x64x64xf32> to vector<1x64xf32>
    %79 = vector.shape_cast %78 : vector<1x64xf32> to vector<1x64x1xf32>
    %80 = vector.broadcast %79 : vector<1x64x1xf32> to vector<1x64x64xf32>
    %81 = arith.subf %77, %80 : vector<1x64x64xf32>
    %82 = arith.truncf %81 : vector<1x64x64xf32> to vector<1x64x64xbf16>
    %83 = math.exp %82 : vector<1x64x64xbf16>
    %84 = arith.extf %83 : vector<1x64x64xbf16> to vector<1x64x64xf32>
    %cst_25 = arith.constant dense<0.000000e+00> : vector<1x64xf32>
    %85 = vector.multi_reduction <add>, %84, %cst_25 [2] : vector<1x64x64xf32> to vector<1x64xf32>
    %86 = vector.shape_cast %85 : vector<1x64xf32> to vector<1x64x1xf32>
    %cst_26 = arith.constant dense<0.000000e+00> : vector<1x64x32xf32>
    %87 = tpu.matmul %83, %76, %cst_26 {dimension_numbers = #tpu.dot_dimension_numbers<[2], [1], [1], [2], [0, 0, 0, 1, 1, 2], [0], [0]>} : vector<1x64x64xbf16>, vector<1x64x32xbf16>, vector<1x64x32xf32> -> vector<1x64x32xf32>
    %88 = tpu.reciprocal %86 {approx = true} : vector<1x64x1xf32> -> vector<1x64x1xf32>
    %89 = vector.broadcast %88 : vector<1x64x1xf32> to vector<1x64x32xf32>
    %90 = arith.mulf %87, %89 : vector<1x64x32xf32>
    %91 = arith.truncf %90 : vector<1x64x32xf32> to vector<1x64x32xbf16>
    %92 = vector.extract_strided_slice %37 {offsets = [0, 0, 96], sizes = [1, 64, 32], strides = [1, 1, 1]} : vector<1x64x384xbf16> to vector<1x64x32xbf16>
    %93 = vector.extract_strided_slice %37 {offsets = [0, 0, 224], sizes = [1, 64, 32], strides = [1, 1, 1]} : vector<1x64x384xbf16> to vector<1x64x32xbf16>
    %94 = vector.extract_strided_slice %37 {offsets = [0, 0, 352], sizes = [1, 64, 32], strides = [1, 1, 1]} : vector<1x64x384xbf16> to vector<1x64x32xbf16>
    %cst_27 = arith.constant dense<0.000000e+00> : vector<1x64x64xf32>
    %95 = tpu.matmul %92, %93, %cst_27 {dimension_numbers = #tpu.dot_dimension_numbers<[2], [2], [1], [1], [0, 0, 0, 1, 1, 1], [0], [0]>} : vector<1x64x32xbf16>, vector<1x64x32xbf16>, vector<1x64x64xf32> -> vector<1x64x64xf32>
    %cst_28 = arith.constant dense<0xFF800000> : vector<1x64xf32>
    %96 = vector.multi_reduction <maximumf>, %95, %cst_28 [2] : vector<1x64x64xf32> to vector<1x64xf32>
    %97 = vector.shape_cast %96 : vector<1x64xf32> to vector<1x64x1xf32>
    %98 = vector.broadcast %97 : vector<1x64x1xf32> to vector<1x64x64xf32>
    %99 = arith.subf %95, %98 : vector<1x64x64xf32>
    %100 = arith.truncf %99 : vector<1x64x64xf32> to vector<1x64x64xbf16>
    %101 = math.exp %100 : vector<1x64x64xbf16>
    %102 = arith.extf %101 : vector<1x64x64xbf16> to vector<1x64x64xf32>
    %cst_29 = arith.constant dense<0.000000e+00> : vector<1x64xf32>
    %103 = vector.multi_reduction <add>, %102, %cst_29 [2] : vector<1x64x64xf32> to vector<1x64xf32>
    %104 = vector.shape_cast %103 : vector<1x64xf32> to vector<1x64x1xf32>
    %cst_30 = arith.constant dense<0.000000e+00> : vector<1x64x32xf32>
    %105 = tpu.matmul %101, %94, %cst_30 {dimension_numbers = #tpu.dot_dimension_numbers<[2], [1], [1], [2], [0, 0, 0, 1, 1, 2], [0], [0]>} : vector<1x64x64xbf16>, vector<1x64x32xbf16>, vector<1x64x32xf32> -> vector<1x64x32xf32>
    %106 = tpu.reciprocal %104 {approx = true} : vector<1x64x1xf32> -> vector<1x64x1xf32>
    %107 = vector.broadcast %106 : vector<1x64x1xf32> to vector<1x64x32xf32>
    %108 = arith.mulf %105, %107 : vector<1x64x32xf32>
    %109 = arith.truncf %108 : vector<1x64x32xf32> to vector<1x64x32xbf16>
    %110 = tpu.concatenate %55, %73, %91, %109 in 2 : vector<1x64x32xbf16>, vector<1x64x32xbf16>, vector<1x64x32xbf16>, vector<1x64x32xbf16> -> vector<1x64x128xbf16>
    %111 = vector.shape_cast %110 : vector<1x64x128xbf16> to vector<64x128xbf16>
    %c0_31 = arith.constant 0 : index
    %c0_32 = arith.constant 0 : index
    %112 = vector.load %arg6[%c0_31, %c0_32] : memref<128x128xbf16, #tpu.memory_space<vmem>>, vector<128x128xbf16>
    %cst_33 = arith.constant dense<0.000000e+00> : vector<64x128xf32>
    %113 = tpu.matmul %111, %112, %cst_33 {dimension_numbers = #tpu.dot_dimension_numbers<[1], [0], [0], [1], [0, 0, 1, 1], [], []>} : vector<64x128xbf16>, vector<128x128xbf16>, vector<64x128xf32> -> vector<64x128xf32>
    %c0_34 = arith.constant 0 : index
    %c0_35 = arith.constant 0 : index
    %114 = vector.load %arg7[%c0_34, %c0_35] : memref<1x128xf32, #tpu.memory_space<vmem>>, vector<1x128xf32>
    %115 = vector.shape_cast %114 : vector<1x128xf32> to vector<128xf32>
    %116 = vector.shape_cast %115 : vector<128xf32> to vector<1x128xf32>
    %117 = vector.broadcast %116 : vector<1x128xf32> to vector<64x128xf32>
    %118 = arith.addf %113, %117 : vector<64x128xf32>
    %119 = vector.shape_cast %118 : vector<64x128xf32> to vector<1x64x128xf32>
    %c0_36 = arith.constant 0 : index
    %c0_37 = arith.constant 0 : index
    %c0_38 = arith.constant 0 : index
    %120 = vector.load %arg8[%c0_36, %c0_37, %c0_38] : memref<1x64x128xf32, #tpu.memory_space<vmem>>, vector<1x64x128xf32>
    tpu.vector_store %arg8[%c0_36, %c0_37, %c0_38], %119 {strides = array<i32>} : memref<1x64x128xf32, #tpu.memory_space<vmem>>, vector<1x64x128xf32>,
    return
  }
  func.func @transform_0(%arg0: i32) -> (i32, i32, i32) {
    %c0_i32 = arith.constant 0 : i32
    %c0_i32_0 = arith.constant 0 : i32
    %c0_i32_1 = arith.constant 0 : i32
    return %arg0, %c0_i32, %c0_i32_0 : i32, i32, i32
  }
  func.func @transform_1(%arg0: i32) -> (i32, i32) {
    %c0_i32 = arith.constant 0 : i32
    %c0_i32_0 = arith.constant 0 : i32
    %c0_i32_1 = arith.constant 0 : i32
    return %c0_i32, %c0_i32_0 : i32, i32
  }
  func.func @transform_2(%arg0: i32) -> (i32, i32) {
    %c0_i32 = arith.constant 0 : i32
    %c0_i32_0 = arith.constant 0 : i32
    %c0_i32_1 = arith.constant 0 : i32
    return %c0_i32, %c0_i32_0 : i32, i32
  }
  func.func @transform_3(%arg0: i32) -> (i32, i32) {
    %c0_i32 = arith.constant 0 : i32
    %c0_i32_0 = arith.constant 0 : i32
    %c0_i32_1 = arith.constant 0 : i32
    return %c0_i32, %c0_i32_0 : i32, i32
  }
  func.func @transform_4(%arg0: i32) -> (i32, i32) {
    %c0_i32 = arith.constant 0 : i32
    %c0_i32_0 = arith.constant 0 : i32
    %c0_i32_1 = arith.constant 0 : i32
    return %c0_i32, %c0_i32_0 : i32, i32
  }
  func.func @transform_5(%arg0: i32) -> (i32, i32) {
    %c0_i32 = arith.constant 0 : i32
    %c0_i32_0 = arith.constant 0 : i32
    %c0_i32_1 = arith.constant 0 : i32
    return %c0_i32, %c0_i32_0 : i32, i32
  }
  func.func @transform_6(%arg0: i32) -> (i32, i32) {
    %c0_i32 = arith.constant 0 : i32
    %c0_i32_0 = arith.constant 0 : i32
    %c0_i32_1 = arith.constant 0 : i32
    return %c0_i32, %c0_i32_0 : i32, i32
  }
  func.func @transform_7(%arg0: i32) -> (i32, i32, i32) {
    %c0_i32 = arith.constant 0 : i32
    %c0_i32_0 = arith.constant 0 : i32
    %c0_i32_1 = arith.constant 0 : i32
    return %arg0, %c0_i32, %c0_i32_0 : i32, i32, i32
  }
}

</mosaic_0001>

<llo_original>
// kernel: tpu_custom_call.1
$region0: #{tpu_custom_call.1}
  #allocation0 [shape = 'u32[]', space=smem, size = 0x4, offset = 0x4, fixed_abs, tag = 'smem constant byte address 0x4 - core index']
  #allocation1 [shape = 'u32[144,128]{1,0:T(1,128)}', space=vmem, size = 0x12000, scoped, tag = 'internal scratch']
  %s0 = inlined_call_operand.hbm [shape: f32[4,64,128], index: 0, kind: input, shape index: {}]
  %s1 = inlined_call_operand.vmem [shape: f32[1,128], index: 1, kind: input, shape index: {}]
  %s2 = inlined_call_operand.vmem [shape: f32[1,128], index: 2, kind: input, shape index: {}]
  %s3 = inlined_call_operand.hbm [shape: bf16[128,384], index: 3, kind: input, shape index: {}]
  %s4 = inlined_call_operand.vmem [shape: f32[1,384], index: 4, kind: input, shape index: {}]
  %s5 = inlined_call_operand.hbm [shape: bf16[128,128], index: 5, kind: input, shape index: {}]
  %s6 = inlined_call_operand.vmem [shape: f32[1,128], index: 6, kind: input, shape index: {}]
  %s7 = inlined_call_operand.hbm [shape: f32[4,64,128], index: 7, kind: output, shape index: {}]
  %s8 = sld [smem:[#allocation0]]
  $region73: #{tpu_custom_call.1} parent=0
    _
  %s10 = ssub.s32 1, %s8
  %s11 = scalar_select 0, %s10, %s8
  $region1: #{tpu_custom_call.1} parent=0
    #allocation2 [shape = 'u8[65536]{0}', space=vmem, size = 0x10000, scoped, tag = 'input window, operand 0']
    #allocation3 [shape = 's32[2]{0}', space=sflag, size = 0x8, scoped, tag = 'scoped memory for tpu_custom_call.1']
    #allocation4 [shape = 's32[2]{0}', space=sflag, size = 0x8, scoped, tag = 'scoped memory for tpu_custom_call.1']
    #allocation5 [shape = 'u8[98304]{0}', space=vmem, size = 0x18000, scoped, tag = 'input window, operand 3, single buffered']
    #allocation6 [shape = 's32[1]{0}', space=sflag, size = 0x4, scoped, tag = 'scoped memory for tpu_custom_call.1']
    #allocation7 [shape = 'u8[32768]{0}', space=vmem, size = 0x8000, scoped, tag = 'input window, operand 5, single buffered']
    #allocation8 [shape = 'u8[65536]{0}', space=vmem, size = 0x10000, scoped, tag = 'output window, operand 0']
    %12 = vsyncpa [#allocation3], 0
    %s13 = scalar_lea.sflag [#allocation3], 1
    %14 = vsyncpa %s13, 0
    %15 = vsyncpa [#allocation6], 0
    %16 = vsyncpa [#allocation4], 0
    %s17 = scalar_lea.sflag [#allocation4], 1
    %18 = vsyncpa %s17, 0
    loop: start=0, step=1, limit=6
    $region2: #{tpu_custom_call.1} parent=1 // loop_pre_header
      _
    $region3: #{tpu_custom_call.1} parent=1 // loop_header
      %s20 = sphi 0, %s24
      %p21 = scmp.ge.s32.totalorder %s20, 6
      %s30 = sphi 0, %s32
      %s33 = sphi 0, %s30
      %s34 = sphi 0, %s33
      %s50 = sphi 0, %s34
      %s54 = sphi 0, %s54
      %s56 = sphi 0, %s54
      %s57 = sphi 0, %s56
      %s71 = sphi 0, %s57
      %s75 = sphi 0, %s75
      %s77 = sphi 0, %s75
      %s78 = sphi 0, %s77
      %s92 = sphi 0, %s78
      %s96 = sphi 0, %s96
      %s98 = sphi 0, %s96
      %s99 = sphi 0, %s98
      %s113 = sphi 0, %s99
      %s117 = sphi 0, %s117
      %s119 = sphi 0, %s117
      %s120 = sphi 0, %s119
      %s134 = sphi 0, %s120
      %s138 = sphi 0, %s138
      %s140 = sphi 0, %s138
      %s141 = sphi 0, %s140
      %s155 = sphi 0, %s141
      %s159 = sphi 0, %s159
      %s161 = sphi 0, %s159
      %s162 = sphi 0, %s161
      %s176 = sphi 0, %s162
      %s182 = sphi 0, %s184
      %s185 = sphi 0, %s182
      %s186 = sphi 0, %s185
      %s202 = sphi 0, %s186
    $region4: #{tpu_custom_call.1} parent=1 // loop_header_branch
      %23 = sbr.rel (%p21) target = $region8
    $region5: #{tpu_custom_call.1} parent=1 // loop_body
      %s25 = ssub.s32 %s20, 1
      %s26 = ssub.s32 %s20, 2
      %s27 = sadd.s32 %s20, 1
      %s28 = ssub.s32 %s20, %s27
      %p29 = scmp.eq.s32.totalorder %s28, 0
      %s31 = sadd.s32 %s30, 1
      %s32 = scalar_select %p29, %s30, %s31
      %p35 = pneg %p29
      %p36 = scmp.eq.s32.totalorder %s20, 3
      %p37 = por %p35, %p36
      %p38 = scmp.ne.s32.totalorder %s30, %s33
      %p39 = scmp.eq.s32.totalorder %s20, 0
      %p40 = por %p38, %p39
      %p41 = scmp.ne.s32.totalorder %s30, %s33
      %p42 = scmp.eq.s32.totalorder %s25, 3
      %p43 = por %p41, %p42
      %p44 = scmp.ne.s32.totalorder %s33, %s34
      %p45 = scmp.eq.s32.totalorder %s25, 0
      %p46 = por %p44, %p45
      %p47 = scmp.ne.s32.totalorder %s33, %s34
      %p48 = scmp.eq.s32.totalorder %s26, 3
      %p49 = por %p47, %p48
      %p51 = scmp.ne.s32.totalorder %s34, %s50
      %p52 = scmp.eq.s32.totalorder %s26, 0
      %p53 = por %p51, %p52
      %s55 = sadd.s32 %s54, 1
      %p58 = scmp.eq.s32.totalorder %s20, 3
      %p59 = scmp.ne.s32.totalorder %s54, %s56
      %p60 = scmp.eq.s32.totalorder %s20, 0
      %p61 = por %p59, %p60
      %p62 = scmp.ne.s32.totalorder %s54, %s56
      %p63 = scmp.eq.s32.totalorder %s25, 3
      %p64 = por %p62, %p63
      %p65 = scmp.ne.s32.totalorder %s56, %s57
      %p66 = scmp.eq.s32.totalorder %s25, 0
      %p67 = por %p65, %p66
      %p68 = scmp.ne.s32.totalorder %s56, %s57
      %p69 = scmp.eq.s32.totalorder %s26, 3
      %p70 = por %p68, %p69
      %p72 = scmp.ne.s32.totalorder %s57, %s71
      %p73 = scmp.eq.s32.totalorder %s26, 0
      %p74 = por %p72, %p73
      %s76 = sadd.s32 %s75, 1
      %p79 = scmp.eq.s32.totalorder %s20, 3
      %p80 = scmp.ne.s32.totalorder %s75, %s77
      %p81 = scmp.eq.s32.totalorder %s20, 0
      %p82 = por %p80, %p81
      %p83 = scmp.ne.s32.totalorder %s75, %s77
      %p84 = scmp.eq.s32.totalorder %s25, 3
      %p85 = por %p83, %p84
      %p86 = scmp.ne.s32.totalorder %s77, %s78
      %p87 = scmp.eq.s32.totalorder %s25, 0
      %p88 = por %p86, %p87
      %p89 = scmp.ne.s32.totalorder %s77, %s78
      %p90 = scmp.eq.s32.totalorder %s26, 3
      %p91 = por %p89, %p90
      %p93 = scmp.ne.s32.totalorder %s78, %s92
      %p94 = scmp.eq.s32.totalorder %s26, 0
      %p95 = por %p93, %p94
      %s97 = sadd.s32 %s96, 1
      %p100 = scmp.eq.s32.totalorder %s20, 3
      %p101 = scmp.ne.s32.totalorder %s96, %s98
      %p102 = scmp.eq.s32.totalorder %s20, 0
      %p103 = por %p101, %p102
      %p104 = scmp.ne.s32.totalorder %s96, %s98
      %p105 = scmp.eq.s32.totalorder %s25, 3
      %p106 = por %p104, %p105
      %p107 = scmp.ne.s32.totalorder %s98, %s99
      %p108 = scmp.eq.s32.totalorder %s25, 0
      %p109 = por %p107, %p108
      %p110 = scmp.ne.s32.totalorder %s98, %s99
      %p111 = scmp.eq.s32.totalorder %s26, 3
      %p112 = por %p110, %p111
      %p114 = scmp.ne.s32.totalorder %s99, %s113
      %p115 = scmp.eq.s32.totalorder %s26, 0
      %p116 = por %p114, %p115
      %s118 = sadd.s32 %s117, 1
      %p121 = scmp.eq.s32.totalorder %s20, 3
      %p122 = scmp.ne.s32.totalorder %s117, %s119
      %p123 = scmp.eq.s32.totalorder %s20, 0
      %p124 = por %p122, %p123
      %p125 = scmp.ne.s32.totalorder %s117, %s119
      %p126 = scmp.eq.s32.totalorder %s25, 3
      %p127 = por %p125, %p126
      %p128 = scmp.ne.s32.totalorder %s119, %s120
      %p129 = scmp.eq.s32.totalorder %s25, 0
      %p130 = por %p128, %p129
      %p131 = scmp.ne.s32.totalorder %s119, %s120
      %p132 = scmp.eq.s32.totalorder %s26, 3
      %p133 = por %p131, %p132
      %p135 = scmp.ne.s32.totalorder %s120, %s134
      %p136 = scmp.eq.s32.totalorder %s26, 0
      %p137 = por %p135, %p136
      %s139 = sadd.s32 %s138, 1
      %p142 = scmp.eq.s32.totalorder %s20, 3
      %p143 = scmp.ne.s32.totalorder %s138, %s140
      %p144 = scmp.eq.s32.totalorder %s20, 0
      %p145 = por %p143, %p144
      %p146 = scmp.ne.s32.totalorder %s138, %s140
      %p147 = scmp.eq.s32.totalorder %s25, 3
      %p148 = por %p146, %p147
      %p149 = scmp.ne.s32.totalorder %s140, %s141
      %p150 = scmp.eq.s32.totalorder %s25, 0
      %p151 = por %p149, %p150
      %p152 = scmp.ne.s32.totalorder %s140, %s141
      %p153 = scmp.eq.s32.totalorder %s26, 3
      %p154 = por %p152, %p153
      %p156 = scmp.ne.s32.totalorder %s141, %s155
      %p157 = scmp.eq.s32.totalorder %s26, 0
      %p158 = por %p156, %p157
      %s160 = sadd.s32 %s159, 1
      %p163 = scmp.eq.s32.totalorder %s20, 3
      %p164 = scmp.ne.s32.totalorder %s159, %s161
      %p165 = scmp.eq.s32.totalorder %s20, 0
      %p166 = por %p164, %p165
      %p167 = scmp.ne.s32.totalorder %s159, %s161
      %p168 = scmp.eq.s32.totalorder %s25, 3
      %p169 = por %p167, %p168
      %p170 = scmp.ne.s32.totalorder %s161, %s162
      %p171 = scmp.eq.s32.totalorder %s25, 0
      %p172 = por %p170, %p171
      %p173 = scmp.ne.s32.totalorder %s161, %s162
      %p174 = scmp.eq.s32.totalorder %s26, 3
      %p175 = por %p173, %p174
      %p177 = scmp.ne.s32.totalorder %s162, %s176
      %p178 = scmp.eq.s32.totalorder %s26, 0
      %p179 = por %p177, %p178
      %s180 = ssub.s32 %s20, %s27
      %p181 = scmp.eq.s32.totalorder %s180, 0
      %s183 = sadd.s32 %s182, 1
      %s184 = scalar_select %p181, %s182, %s183
      %p187 = pneg %p181
      %p188 = scmp.eq.s32.totalorder %s20, 3
      %p189 = por %p187, %p188
      %p190 = scmp.ne.s32.totalorder %s182, %s185
      %p191 = scmp.eq.s32.totalorder %s20, 0
      %p192 = por %p190, %p191
      %p193 = scmp.ne.s32.totalorder %s182, %s185
      %p194 = scmp.eq.s32.totalorder %s25, 3
      %p195 = por %p193, %p194
      %p196 = scmp.ne.s32.totalorder %s185, %s186
      %p197 = scmp.eq.s32.totalorder %s25, 0
      %p198 = por %p196, %p197
      %p199 = scmp.ne.s32.totalorder %s185, %s186
      %p200 = scmp.eq.s32.totalorder %s26, 3
      %p201 = por %p199, %p200
      %p203 = scmp.ne.s32.totalorder %s186, %s202
      %p204 = scmp.eq.s32.totalorder %s26, 0
      %p205 = por %p203, %p204
      %p206 = scmp.le.s32.totalorder 1, %s20
      %p207 = scmp.lt.s32.totalorder %s20, 5
      %p208 = pnand %p206, %p207
      %p209 = pneg %p208
      // Predicated region
      $region9: #{tpu_custom_call.1} parent=5 // pred_check
        _
      $region10: #{tpu_custom_call.1} parent=5 // pred_check_branch
        %211 = sbr.rel (%p208) target = $region12
      $region11: #{tpu_custom_call.1} parent=5 // pred_region
        %s212 = ssub.s32 %s20, 1
        // Predicated region
        $region13: #{tpu_custom_call.1} parent=11 // pred_check
          %p213 = pneg %p67
        $region14: #{tpu_custom_call.1} parent=11 // pred_check_branch
          %215 = sbr.rel (%p213) target = $region16
        $region15: #{tpu_custom_call.1} parent=11 // pred_region
          _
        $region16: #{tpu_custom_call.1} parent=11 // pred_fallthru
          _
        // Predicated region
        $region17: #{tpu_custom_call.1} parent=11 // pred_check
          %p216 = pneg %p88
        $region18: #{tpu_custom_call.1} parent=11 // pred_check_branch
          %218 = sbr.rel (%p216) target = $region20
        $region19: #{tpu_custom_call.1} parent=11 // pred_region
          _
        $region20: #{tpu_custom_call.1} parent=11 // pred_fallthru
          _
        // Predicated region
        $region21: #{tpu_custom_call.1} parent=11 // pred_check
          %p219 = pneg %p109
        $region22: #{tpu_custom_call.1} parent=11 // pred_check_branch
          %221 = sbr.rel (%p219) target = $region24
        $region23: #{tpu_custom_call.1} parent=11 // pred_region
          %s223 = ssub.s32 3072, 3072
          %224 = vsyncadd [#allocation6], %s223
          %s225 = sshll.u32 [#allocation5], 4
          %s226 = int_to_ptr.vmem [resolvable:$true] %s225
          %231 = dma.hbm_to_vmem [thread:$0]  %s3, 3072, %s226, [#allocation6], 192, 192, 12
        $region24: #{tpu_custom_call.1} parent=11 // pred_fallthru
          _
        // Predicated region
        $region25: #{tpu_custom_call.1} parent=11 // pred_check
          %p232 = pneg %p130
        $region26: #{tpu_custom_call.1} parent=11 // pred_check_branch
          %234 = sbr.rel (%p232) target = $region28
        $region27: #{tpu_custom_call.1} parent=11 // pred_region
          _
        $region28: #{tpu_custom_call.1} parent=11 // pred_fallthru
          _
        // Predicated region
        $region29: #{tpu_custom_call.1} parent=11 // pred_check
          %p235 = pneg %p151
        $region30: #{tpu_custom_call.1} parent=11 // pred_check_branch
          %237 = sbr.rel (%p235) target = $region32
        $region31: #{tpu_custom_call.1} parent=11 // pred_region
          %s239 = ssub.s32 1024, 1024
          %240 = vsyncadd [#allocation6], %s239
          %s241 = sshll.u32 [#allocation7], 4
          %s242 = int_to_ptr.vmem [resolvable:$true] %s241
          %247 = dma.hbm_to_vmem [thread:$0]  %s5, 1024, %s242, [#allocation6], 64, 64, 4
        $region32: #{tpu_custom_call.1} parent=11 // pred_fallthru
          _
        // Predicated region
        $region33: #{tpu_custom_call.1} parent=11 // pred_check
          %p248 = pneg %p172
        $region34: #{tpu_custom_call.1} parent=11 // pred_check_branch
          %250 = sbr.rel (%p248) target = $region36
        $region35: #{tpu_custom_call.1} parent=11 // pred_region
          _
        $region36: #{tpu_custom_call.1} parent=11 // pred_fallthru
          _
      $region12: #{tpu_custom_call.1} parent=5 // pred_fallthru
        _
      %p251 = scmp.lt.s32.totalorder %s20, 4
      // Predicated region
      $region37: #{tpu_custom_call.1} parent=5 // pred_check
        %p252 = pneg %p251
      $region38: #{tpu_custom_call.1} parent=5 // pred_check_branch
        %254 = sbr.rel (%p252) target = $region40
      $region39: #{tpu_custom_call.1} parent=5 // pred_region
        // Predicated region
        $region41: #{tpu_custom_call.1} parent=39 // pred_check
          %p255 = pneg %p40
        $region42: #{tpu_custom_call.1} parent=39 // pred_check_branch
          %257 = sbr.rel (%p255) target = $region44
        $region43: #{tpu_custom_call.1} parent=39 // pred_region
          %s258 = sand.u32 %s30, 1
          %s259 = scalar_lea.sflag [#allocation3], %s258
          %s260 = sand.u32 %s30, 1
          %s261 = smul.addr %s260, 64
          %s262 = scalar_lea.vmem [#allocation2], %s261
          %s264 = ssub.s32 1024, 1024
          %265 = vsyncadd %s259, %s264
          %s266 = smul.addr %s20, 8
          %s267 = smul.addr %s266, 128
          %s268 = scalar_lea.hbm %s0, %s267
          %s269 = sshll.u32 %s262, 4
          %s270 = int_to_ptr.vmem [resolvable:$true] %s269
          %275 = dma.hbm_to_vmem [thread:$0]  %s268, 1024, %s270, %s259, 128, 128, 8
        $region44: #{tpu_custom_call.1} parent=39 // pred_fallthru
          _
      $region40: #{tpu_custom_call.1} parent=5 // pred_fallthru
        _
      %p276 = scmp.le.s32.totalorder 1, %s20
      %p277 = scmp.lt.s32.totalorder %s20, 5
      %p278 = pnand %p276, %p277
      %p279 = pneg %p278
      // Predicated region
      $region45: #{tpu_custom_call.1} parent=5 // pred_check
        _
      $region46: #{tpu_custom_call.1} parent=5 // pred_check_branch
        %281 = sbr.rel (%p278) target = $region48
      $region47: #{tpu_custom_call.1} parent=5 // pred_region
        %s282 = ssub.s32 %s20, 1
        %s283 = sand.u32 %s33, 1
        %s284 = scalar_lea.sflag [#allocation3], %s283
        %s285 = sand.u32 %s33, 1
        %s286 = smul.addr %s285, 64
        %s287 = scalar_lea.vmem [#allocation2], %s286
        // Predicated region
        $region49: #{tpu_custom_call.1} parent=47 // pred_check
          %p288 = pneg %p46
        $region50: #{tpu_custom_call.1} parent=47 // pred_check_branch
          %290 = sbr.rel (%p288) target = $region52
        $region51: #{tpu_custom_call.1} parent=47 // pred_region
          %291 = dma.done %s284, 1024
        $region52: #{tpu_custom_call.1} parent=47 // pred_fallthru
          _
        // Predicated region
        $region53: #{tpu_custom_call.1} parent=47 // pred_check
          %p292 = pneg %p109
        $region54: #{tpu_custom_call.1} parent=47 // pred_check_branch
          %294 = sbr.rel (%p292) target = $region56
        $region55: #{tpu_custom_call.1} parent=47 // pred_region
          %295 = dma.done [#allocation6], 3072
        $region56: #{tpu_custom_call.1} parent=47 // pred_fallthru
          _
        // Predicated region
        $region57: #{tpu_custom_call.1} parent=47 // pred_check
          %p296 = pneg %p151
        $region58: #{tpu_custom_call.1} parent=47 // pred_check_branch
          %298 = sbr.rel (%p296) target = $region60
        $region59: #{tpu_custom_call.1} parent=47 // pred_region
          %299 = dma.done [#allocation6], 1024
        $region60: #{tpu_custom_call.1} parent=47 // pred_fallthru
          _
        %s300 = sand.u32 %s33, 1
        %s301 = scalar_lea.sflag [#allocation3], %s300
        %s302 = sand.u32 %s33, 1
        %s303 = smul.addr %s302, 64
        %s304 = scalar_lea.vmem [#allocation2], %s303
        %p305 = pneg %p46
        %p306 = pneg %p43
        %p307 = pneg %p67
        %p308 = pneg %p64
        %p309 = pneg %p88
        %p310 = pneg %p85
        %p311 = pneg %p109
        %p312 = pneg %p106
        %p313 = pneg %p130
        %p314 = pneg %p127
        %p315 = pneg %p151
        %p316 = pneg %p148
        %p317 = pneg %p172
        %p318 = pneg %p169
        %p319 = pneg %p198
        %p320 = pneg %p195
        %s321 = sand.u32 %s185, 1
        %s322 = scalar_lea.sflag [#allocation4], %s321
        %s323 = sand.u32 %s185, 1
        %s324 = smul.addr %s323, 64
        %s325 = scalar_lea.vmem [#allocation8], %s324
        %v327 = vld [vmem:[%s287] sm:$0xff]
        %v328 = vld [vmem:[%s287 + $0x8] sm:$0xff]
        %v329 = vld [vmem:[%s287 + $0x10] sm:$0xff]
        %v330 = vld [vmem:[%s287 + $0x18] sm:$0xff]
        %v331 = vld [vmem:[%s287 + $0x20] sm:$0xff]
        %v332 = vld [vmem:[%s287 + $0x28] sm:$0xff]
        %v333 = vld [vmem:[%s287 + $0x30] sm:$0xff]
        %v334 = vld [vmem:[%s287 + $0x38] sm:$0xff]
        %335 = vadd.xlane.f32.xlu0 %v327
        %v336 = vpop.xlane.xlu0 %335
        %337 = vadd.xlane.f32.xlu0 %v328
        %v338 = vpop.xlane.xlu0 %337
        %339 = vadd.xlane.f32.xlu0 %v329
        %v340 = vpop.xlane.xlu0 %339
        %341 = vadd.xlane.f32.xlu0 %v330
        %v342 = vpop.xlane.xlu0 %341
        %343 = vadd.xlane.f32.xlu0 %v331
        %v344 = vpop.xlane.xlu0 %343
        %345 = vadd.xlane.f32.xlu0 %v332
        %v346 = vpop.xlane.xlu0 %345
        %347 = vadd.xlane.f32.xlu0 %v333
        %v348 = vpop.xlane.xlu0 %347
        %349 = vadd.xlane.f32.xlu0 %v334
        %v350 = vpop.xlane.xlu0 %349
        %v351 = vrcp.pop 128.0
        %v352 = vmul.f32 %v336, %v351
        %v353 = vmul.f32 %v338, %v351
        %v354 = vmul.f32 %v340, %v351
        %v355 = vmul.f32 %v342, %v351
        %v356 = vmul.f32 %v344, %v351
        %v357 = vmul.f32 %v346, %v351
        %v358 = vmul.f32 %v348, %v351
        %v359 = vmul.f32 %v350, %v351
        %v360 = vsub.f32 %v327, %v352
        %v361 = vsub.f32 %v328, %v353
        %v362 = vsub.f32 %v329, %v354
        %v363 = vsub.f32 %v330, %v355
        %v364 = vsub.f32 %v331, %v356
        %v365 = vsub.f32 %v332, %v357
        %v366 = vsub.f32 %v333, %v358
        %v367 = vsub.f32 %v334, %v359
        %v368 = vmul.f32 %v360, %v360
        %v369 = vmul.f32 %v361, %v361
        %v370 = vmul.f32 %v362, %v362
        %v371 = vmul.f32 %v363, %v363
        %v372 = vmul.f32 %v364, %v364
        %v373 = vmul.f32 %v365, %v365
        %v374 = vmul.f32 %v366, %v366
        %v375 = vmul.f32 %v367, %v367
        %376 = vadd.xlane.f32.xlu0 %v368
        %v377 = vpop.xlane.xlu0 %376
        %378 = vadd.xlane.f32.xlu0 %v369
        %v379 = vpop.xlane.xlu0 %378
        %380 = vadd.xlane.f32.xlu0 %v370
        %v381 = vpop.xlane.xlu0 %380
        %382 = vadd.xlane.f32.xlu0 %v371
        %v383 = vpop.xlane.xlu0 %382
        %384 = vadd.xlane.f32.xlu0 %v372
        %v385 = vpop.xlane.xlu0 %384
        %386 = vadd.xlane.f32.xlu0 %v373
        %v387 = vpop.xlane.xlu0 %386
        %388 = vadd.xlane.f32.xlu0 %v374
        %v389 = vpop.xlane.xlu0 %388
        %390 = vadd.xlane.f32.xlu0 %v375
        %v391 = vpop.xlane.xlu0 %390
        %v392 = vmul.f32 %v377, %v351
        %v393 = vmul.f32 %v379, %v351
        %v394 = vmul.f32 %v381, %v351
        %v395 = vmul.f32 %v383, %v351
        %v396 = vmul.f32 %v385, %v351
        %v397 = vmul.f32 %v387, %v351
        %v398 = vmul.f32 %v389, %v351
        %v399 = vmul.f32 %v391, %v351
        %v400 = vadd.f32 %v392, 1e-05
        %v401 = vadd.f32 %v393, 1e-05
        %v402 = vadd.f32 %v394, 1e-05
        %v403 = vadd.f32 %v395, 1e-05
        %v404 = vadd.f32 %v396, 1e-05
        %v405 = vadd.f32 %v397, 1e-05
        %v406 = vadd.f32 %v398, 1e-05
        %v407 = vadd.f32 %v399, 1e-05
        %v408 = vrsqrt.pop %v400
        %v409 = vrsqrt.pop %v401
        %v410 = vrsqrt.pop %v402
        %v411 = vrsqrt.pop %v403
        %v412 = vrsqrt.pop %v404
        %v413 = vrsqrt.pop %v405
        %v414 = vrsqrt.pop %v406
        %v415 = vrsqrt.pop %v407
        %v416 = vmul.f32 %v360, %v408
        %v417 = vmul.f32 %v361, %v409
        %v418 = vmul.f32 %v362, %v410
        %v419 = vmul.f32 %v363, %v411
        %v420 = vmul.f32 %v364, %v412
        %v421 = vmul.f32 %v365, %v413
        %v422 = vmul.f32 %v366, %v414
        %v423 = vmul.f32 %v367, %v415
        %v424 = vld [vmem:[%s1] sm:$0x1]
        %v426 = vlaneseq
        %v427 = vshrl.u32 %v426, 7
        %v428 = vsub.s32 0, %v427
        %v429 = vrot.slane %v424, %v428
        %v431 = vmul.f32 %v416, %v429
        %v432 = vmul.f32 %v417, %v429
        %v433 = vmul.f32 %v418, %v429
        %v434 = vmul.f32 %v419, %v429
        %v435 = vmul.f32 %v420, %v429
        %v436 = vmul.f32 %v421, %v429
        %v437 = vmul.f32 %v422, %v429
        %v438 = vmul.f32 %v423, %v429
        %v439 = vld [vmem:[%s2] sm:$0x1]
        %v441 = vlaneseq
        %v442 = vshrl.u32 %v441, 7
        %v443 = vsub.s32 0, %v442
        %v444 = vrot.slane %v439, %v443
        %v446 = vadd.f32 %v431, %v444
        %v447 = vadd.f32 %v432, %v444
        %v448 = vadd.f32 %v433, %v444
        %v449 = vadd.f32 %v434, %v444
        %v450 = vadd.f32 %v435, %v444
        %v451 = vadd.f32 %v436, %v444
        %v452 = vadd.f32 %v437, %v444
        %v453 = vadd.f32 %v438, %v444
        %v454 = vpack.c.bf16 %v447, %v446
        %v455 = vpack.c.bf16 %v449, %v448
        %v456 = vpack.c.bf16 %v451, %v450
        %v457 = vpack.c.bf16 %v453, %v452
        %v458 = vld [vmem:[#allocation5] sm:$0xff]
        %v459 = vld [vmem:[#allocation5 + $0x8] sm:$0xf]
        %v460 = vld [vmem:[#allocation5 + $0xc] sm:$0xff]
        %v461 = vld [vmem:[#allocation5 + $0x14] sm:$0xf]
        %v462 = vld [vmem:[#allocation5 + $0x18] sm:$0xff]
        %v463 = vld [vmem:[#allocation5 + $0x20] sm:$0xf]
        %v464 = vld [vmem:[#allocation5 + $0x24] sm:$0xff]
        %v465 = vld [vmem:[#allocation5 + $0x2c] sm:$0xf]
        %v466 = vld [vmem:[#allocation5 + $0x30] sm:$0xff]
        %v467 = vld [vmem:[#allocation5 + $0x38] sm:$0xf]
        %v468 = vld [vmem:[#allocation5 + $0x3c] sm:$0xff]
        %v469 = vld [vmem:[#allocation5 + $0x44] sm:$0xf]
        %v470 = vld [vmem:[#allocation5 + $0x48] sm:$0xff]
        %v471 = vld [vmem:[#allocation5 + $0x50] sm:$0xf]
        %v472 = vld [vmem:[#allocation5 + $0x54] sm:$0xff]
        %v473 = vld [vmem:[#allocation5 + $0x5c] sm:$0xf]
        %v474 = vld [vmem:[#allocation5 + $0x60] sm:$0xff]
        %v475 = vld [vmem:[#allocation5 + $0x68] sm:$0xf]
        %v476 = vld [vmem:[#allocation5 + $0x6c] sm:$0xff]
        %v477 = vld [vmem:[#allocation5 + $0x74] sm:$0xf]
        %v478 = vld [vmem:[#allocation5 + $0x78] sm:$0xff]
        %v479 = vld [vmem:[#allocation5 + $0x80] sm:$0xf]
        %v480 = vld [vmem:[#allocation5 + $0x84] sm:$0xff]
        %v481 = vld [vmem:[#allocation5 + $0x8c] sm:$0xf]
        %v482 = vld [vmem:[#allocation5 + $0x90] sm:$0xff]
        %v483 = vld [vmem:[#allocation5 + $0x98] sm:$0xf]
        %v484 = vld [vmem:[#allocation5 + $0x9c] sm:$0xff]
        %v485 = vld [vmem:[#allocation5 + $0xa4] sm:$0xf]
        %v486 = vld [vmem:[#allocation5 + $0xa8] sm:$0xff]
        %v487 = vld [vmem:[#allocation5 + $0xb0] sm:$0xf]
        %v488 = vld [vmem:[#allocation5 + $0xb4] sm:$0xff]
        %v489 = vld [vmem:[#allocation5 + $0xbc] sm:$0xf]
        %v490 = vld [vmem:[%s4] sm:$0x7]
        %v492 = vlaneseq
        %v493 = vshrl.u32 %v492, 7
        %v494 = vsub.s32 0, %v493
        %v495 = vrot.slane %v490, %v494
        %v496 = vlaneseq
        %v497 = vshrl.u32 %v496, 7
        %v498 = vsub.s32 1, %v497
        %v499 = vrot.slane %v490, %v498
        %v500 = vlaneseq
        %v501 = vshrl.u32 %v500, 7
        %v502 = vsub.s32 2, %v501
        %v503 = vrot.slane %v490, %v502
        %v539 = vunpack.c.l.b16 %v458
        %v540 = vunpack.c.h.b16 %v458
        %v541 = vunpack.c.l.b16 %v459
        %v542 = vunpack.c.l.b16 %v460
        %v543 = vunpack.c.h.b16 %v460
        %v544 = vunpack.c.l.b16 %v461
        %v545 = vunpack.c.l.b16 %v462
        %v546 = vunpack.c.h.b16 %v462
        %v547 = vunpack.c.l.b16 %v463
        %v548 = vunpack.c.l.b16 %v464
        %v549 = vunpack.c.h.b16 %v464
        %v550 = vunpack.c.l.b16 %v465
        %v551 = vunpack.c.l.b16 %v466
        %v552 = vunpack.c.h.b16 %v466
        %v553 = vunpack.c.l.b16 %v467
        %v554 = vunpack.c.l.b16 %v468
        %v555 = vunpack.c.h.b16 %v468
        %v556 = vunpack.c.l.b16 %v469
        %v557 = vunpack.c.l.b16 %v470
        %v558 = vunpack.c.h.b16 %v470
        %v559 = vunpack.c.l.b16 %v471
        %v560 = vunpack.c.l.b16 %v472
        %v561 = vunpack.c.h.b16 %v472
        %v562 = vunpack.c.l.b16 %v473
        %v563 = vunpack.c.l.b16 %v474
        %v564 = vunpack.c.h.b16 %v474
        %v565 = vunpack.c.l.b16 %v475
        %v566 = vunpack.c.l.b16 %v476
        %v567 = vunpack.c.h.b16 %v476
        %v568 = vunpack.c.l.b16 %v477
        %v569 = vunpack.c.l.b16 %v478
        %v570 = vunpack.c.h.b16 %v478
        %v571 = vunpack.c.l.b16 %v479
        %v572 = vunpack.c.l.b16 %v480
        %v573 = vunpack.c.h.b16 %v480
        %v574 = vunpack.c.l.b16 %v481
        %v575 = vunpack.c.l.b16 %v482
        %v576 = vunpack.c.h.b16 %v482
        %v577 = vunpack.c.l.b16 %v483
        %v578 = vunpack.c.l.b16 %v484
        %v579 = vunpack.c.h.b16 %v484
        %v580 = vunpack.c.l.b16 %v485
        %v581 = vunpack.c.l.b16 %v486
        %v582 = vunpack.c.h.b16 %v486
        %v583 = vunpack.c.l.b16 %v487
        %v584 = vunpack.c.l.b16 %v488
        %v585 = vunpack.c.h.b16 %v488
        %v586 = vunpack.c.l.b16 %v489
        %v587 = vpack.c.b16 %v542, %v539
        %v588 = vpack.c.b16 %v543, %v540
        %v589 = vpack.c.b16 %v544, %v541
        %v590 = vpack.c.b16 %v548, %v545
        %v591 = vpack.c.b16 %v549, %v546
        %v592 = vpack.c.b16 %v550, %v547
        %v593 = vpack.c.b16 %v554, %v551
        %v594 = vpack.c.b16 %v555, %v552
        %v595 = vpack.c.b16 %v556, %v553
        %v596 = vpack.c.b16 %v560, %v557
        %v597 = vpack.c.b16 %v561, %v558
        %v598 = vpack.c.b16 %v562, %v559
        %v599 = vpack.c.b16 %v566, %v563
        %v600 = vpack.c.b16 %v567, %v564
        %v601 = vpack.c.b16 %v568, %v565
        %v602 = vpack.c.b16 %v572, %v569
        %v603 = vpack.c.b16 %v573, %v570
        %v604 = vpack.c.b16 %v574, %v571
        %v605 = vpack.c.b16 %v578, %v575
        %v606 = vpack.c.b16 %v579, %v576
        %v607 = vpack.c.b16 %v580, %v577
        %v608 = vpack.c.b16 %v584, %v581
        %v609 = vpack.c.b16 %v585, %v582
        %v610 = vpack.c.b16 %v586, %v583
        %635 = vmatprep.subr.bf16.mxu0 %v588
        %636 = vmatpush1.bf16.msra.mxu0 %v587
        %637 = vmatprep.subr.bf16.mxu0 %v591
        %638 = vmatpush1.bf16.msra.mxu0 %v590
        %639 = vmatprep.subr.bf16.mxu0 %v594
        %640 = vmatpush1.bf16.msra.mxu0 %v593
        %641 = vmatprep.subr.bf16.mxu0 %v597
        %642 = vmatpush1.bf16.msra.mxu0 %v596
        %643 = vmatprep.subr.bf16.mxu0 %v600
        %644 = vmatpush1.bf16.msra.mxu0 %v599
        %645 = vmatprep.subr.bf16.mxu0 %v603
        %646 = vmatpush1.bf16.msra.mxu0 %v602
        %647 = vmatprep.subr.bf16.mxu0 %v606
        %648 = vmatpush1.bf16.msra.mxu0 %v605
        %649 = vmatprep.subr.bf16.mxu0 %v609
        %650 = vmatpush1.bf16.msra.mxu0 %v608
        %651 = vmatprep.subr.bf16.mxu0 0
        %652 = vmatpush1.bf16.msra.mxu0 0
        %653 = vmatprep.subr.bf16.mxu0 0
        %654 = vmatpush1.bf16.msra.mxu0 0
        %655 = vmatprep.subr.bf16.mxu0 0
        %656 = vmatpush1.bf16.msra.mxu0 0
        %657 = vmatprep.subr.bf16.mxu0 0
        %658 = vmatpush1.bf16.msra.mxu0 0
        %659 = vmatprep.subr.bf16.mxu0 0
        %660 = vmatpush1.bf16.msra.mxu0 0
        %661 = vmatprep.subr.bf16.mxu0 0
        %662 = vmatpush1.bf16.msra.mxu0 0
        %663 = vmatprep.subr.bf16.mxu0 0
        %664 = vmatpush1.bf16.msra.mxu0 0
        %665 = vmatprep.subr.bf16.mxu0 0
        %666 = vmatpush1.bf16.msra.mxu0 0
        %667 = vmatprep.mubr.bf16.mxu0 0
        %668 = vmatmul.mubr.bf16.gmra.mrb[0].mxu0 %v454
        %v669 = vpop.f32.mrb[0].mxu0
        %v670 = vadd.f32 %v495, %v669
        %v671 = vpop.f32.mrb[0].mxu0
        %v672 = vadd.f32 %v499, %v671
        %v673 = vpop.f32.mrb[0].mxu0
        %v674 = vadd.f32 %v495, %v673
        %v675 = vpop.f32.mrb[0].mxu0
        %v676 = vadd.f32 %v499, %v675
        %677 = vmatprep.mubr.bf16.mxu0 0
        %678 = vmatmul.mubr.bf16.gmra.mrb[0].mxu0 %v455
        %v679 = vpop.f32.mrb[0].mxu0
        %v680 = vadd.f32 %v495, %v679
        %v681 = vpop.f32.mrb[0].mxu0
        %v682 = vadd.f32 %v499, %v681
        %v683 = vpop.f32.mrb[0].mxu0
        %v684 = vadd.f32 %v495, %v683
        %v685 = vpop.f32.mrb[0].mxu0
        %v686 = vadd.f32 %v499, %v685
        %687 = vmatprep.mubr.bf16.mxu0 0
        %688 = vmatmul.mubr.bf16.gmra.mrb[0].mxu0 %v456
        %v689 = vpop.f32.mrb[0].mxu0
        %v690 = vadd.f32 %v495, %v689
        %v691 = vpop.f32.mrb[0].mxu0
        %v692 = vadd.f32 %v499, %v691
        %v693 = vpop.f32.mrb[0].mxu0
        %v694 = vadd.f32 %v495, %v693
        %v695 = vpop.f32.mrb[0].mxu0
        %v696 = vadd.f32 %v499, %v695
        %697 = vmatprep.mubr.bf16.mxu0 0
        %698 = vmatmul.mubr.bf16.gmra.mrb[0].mxu0 %v457
        %v699 = vpop.f32.mrb[0].mxu0
        %v700 = vadd.f32 %v495, %v699
        %v701 = vpop.f32.mrb[0].mxu0
        %v702 = vadd.f32 %v499, %v701
        %v703 = vpop.f32.mrb[0].mxu0
        %v704 = vadd.f32 %v495, %v703
        %v705 = vpop.f32.mrb[0].mxu0
        %v706 = vadd.f32 %v499, %v705
        %707 = vdwg.mxu0
        %708 = vmatprep.subr.bf16.mxu0 0
        %709 = vmatpush1.bf16.msra.mxu0 %v589
        %710 = vmatprep.subr.bf16.mxu0 0
        %711 = vmatpush1.bf16.msra.mxu0 %v592
        %712 = vmatprep.subr.bf16.mxu0 0
        %713 = vmatpush1.bf16.msra.mxu0 %v595
        %714 = vmatprep.subr.bf16.mxu0 0
        %715 = vmatpush1.bf16.msra.mxu0 %v598
        %716 = vmatprep.subr.bf16.mxu0 0
        %717 = vmatpush1.bf16.msra.mxu0 %v601
        %718 = vmatprep.subr.bf16.mxu0 0
        %719 = vmatpush1.bf16.msra.mxu0 %v604
        %720 = vmatprep.subr.bf16.mxu0 0
        %721 = vmatpush1.bf16.msra.mxu0 %v607
        %722 = vmatprep.subr.bf16.mxu0 0
        %723 = vmatpush1.bf16.msra.mxu0 %v610
        %724 = vmatprep.subr.bf16.mxu0 0
        %725 = vmatpush1.bf16.msra.mxu0 0
        %726 = vmatprep.subr.bf16.mxu0 0
        %727 = vmatpush1.bf16.msra.mxu0 0
        %728 = vmatprep.subr.bf16.mxu0 0
        %729 = vmatpush1.bf16.msra.mxu0 0
        %730 = vmatprep.subr.bf16.mxu0 0
        %731 = vmatpush1.bf16.msra.mxu0 0
        %732 = vmatprep.subr.bf16.mxu0 0
        %733 = vmatpush1.bf16.msra.mxu0 0
        %734 = vmatprep.subr.bf16.mxu0 0
        %735 = vmatpush1.bf16.msra.mxu0 0
        %736 = vmatprep.subr.bf16.mxu0 0
        %737 = vmatpush1.bf16.msra.mxu0 0
        %738 = vmatprep.subr.bf16.mxu0 0
        %739 = vmatpush1.bf16.msra.mxu0 0
        %740 = vmatprep.mubr.bf16.mxu0 0
        %741 = vmatmul.mubr.bf16.gmra.mrb[0].mxu0 %v454
        %v742 = vpop.f32.mrb[0].mxu0
        %v743 = vadd.f32 %v503, %v742
        %v744 = vpop.f32.mrb[0].mxu0
        %v745 = vpop.f32.mrb[0].mxu0
        %v746 = vadd.f32 %v503, %v745
        %v747 = vpop.f32.mrb[0].mxu0
        %748 = vmatprep.mubr.bf16.mxu0 0
        %749 = vmatmul.mubr.bf16.gmra.mrb[0].mxu0 %v455
        %v750 = vpop.f32.mrb[0].mxu0
        %v751 = vadd.f32 %v503, %v750
        %v752 = vpop.f32.mrb[0].mxu0
        %v753 = vpop.f32.mrb[0].mxu0
        %v754 = vadd.f32 %v503, %v753
        %v755 = vpop.f32.mrb[0].mxu0
        %756 = vmatprep.mubr.bf16.mxu0 0
        %757 = vmatmul.mubr.bf16.gmra.mrb[0].mxu0 %v456
        %v758 = vpop.f32.mrb[0].mxu0
        %v759 = vadd.f32 %v503, %v758
        %v760 = vpop.f32.mrb[0].mxu0
        %v761 = vpop.f32.mrb[0].mxu0
        %v762 = vadd.f32 %v503, %v761
        %v763 = vpop.f32.mrb[0].mxu0
        %764 = vmatprep.mubr.bf16.mxu0 0
        %765 = vmatmul.mubr.bf16.gmra.mrb[0].mxu0 %v457
        %v766 = vpop.f32.mrb[0].mxu0
        %v767 = vadd.f32 %v503, %v766
        %v768 = vpop.f32.mrb[0].mxu0
        %v769 = vpop.f32.mrb[0].mxu0
        %v770 = vadd.f32 %v503, %v769
        %v771 = vpop.f32.mrb[0].mxu0
        %772 = vdwg.mxu0
        %v773 = vpack.c.bf16 %v674, %v670
        %v774 = vpack.c.bf16 %v676, %v672
        %v775 = vpack.c.bf16 %v746, %v743
        %v776 = vpack.c.bf16 %v684, %v680
        %v777 = vpack.c.bf16 %v686, %v682
        %v778 = vpack.c.bf16 %v754, %v751
        %v779 = vpack.c.bf16 %v694, %v690
        %v780 = vpack.c.bf16 %v696, %v692
        %v781 = vpack.c.bf16 %v762, %v759
        %v782 = vpack.c.bf16 %v704, %v700
        %v783 = vpack.c.bf16 %v706, %v702
        %v784 = vpack.c.bf16 %v770, %v767
        %vm785 = vcmask 261120
        %v787 = vsel %vm785, %v773, 0
        %v790 = vsel %vm785, %v776, 0
        %v793 = vsel %vm785, %v779, 0
        %v796 = vsel %vm785, %v782, 0
        %v799 = vsel %vm785, %v774, 0
        %v802 = vsel %vm785, %v777, 0
        %v805 = vsel %vm785, %v780, 0
        %v808 = vsel %vm785, %v783, 0
        %810 = vmatprep.subr.bf16.mxu0 0
        %811 = vmatpush1.bf16.xpose.msra.mxu0 %v799
        %812 = vmatprep.subr.bf16.mxu0 0
        %813 = vmatpush1.bf16.xpose.msra.mxu0 %v802
        %814 = vmatprep.subr.bf16.mxu0 0
        %815 = vmatpush1.bf16.xpose.msra.mxu0 %v805
        %816 = vmatprep.subr.bf16.mxu0 0
        %817 = vmatpush1.bf16.xpose.msra.mxu0 %v808
        %818 = vmatprep.subr.bf16.mxu0 0
        %819 = vmatpush1.bf16.xpose.msra.mxu0 0
        %820 = vmatprep.subr.bf16.mxu0 0
        %821 = vmatpush1.bf16.xpose.msra.mxu0 0
        %822 = vmatprep.subr.bf16.mxu0 0
        %823 = vmatpush1.bf16.xpose.msra.mxu0 0
        %824 = vmatprep.subr.bf16.mxu0 0
        %825 = vmatpush1.bf16.xpose.msra.mxu0 0
        %826 = vmatprep.subr.bf16.mxu0 0
        %827 = vmatpush1.bf16.xpose.msra.mxu0 0
        %828 = vmatprep.subr.bf16.mxu0 0
        %829 = vmatpush1.bf16.xpose.msra.mxu0 0
        %830 = vmatprep.subr.bf16.mxu0 0
        %831 = vmatpush1.bf16.xpose.msra.mxu0 0
        %832 = vmatprep.subr.bf16.mxu0 0
        %833 = vmatpush1.bf16.xpose.msra.mxu0 0
        %834 = vmatprep.subr.bf16.mxu0 0
        %835 = vmatpush1.bf16.xpose.msra.mxu0 0
        %836 = vmatprep.subr.bf16.mxu0 0
        %837 = vmatpush1.bf16.xpose.msra.mxu0 0
        %838 = vmatprep.subr.bf16.mxu0 0
        %839 = vmatpush1.bf16.xpose.msra.mxu0 0
        %840 = vmatprep.subr.bf16.mxu0 0
        %841 = vmatpush1.bf16.xpose.msra.mxu0 0
        %842 = vmatprep.mubr.bf16.mxu0 0
        %843 = vmatmul.mubr.bf16.gmra.mrb[0].mxu0 %v787
        %v844 = vpop.f32.mrb[0].mxu0
        %v845 = vadd.f32 0.0, %v844
        %v846 = vpop.f32.mrb[0].mxu0
        %v847 = vpop.f32.mrb[0].mxu0
        %v848 = vadd.f32 0.0, %v847
        %v849 = vpop.f32.mrb[0].mxu0
        %850 = vmatprep.mubr.bf16.mxu0 0
        %851 = vmatmul.mubr.bf16.gmra.mrb[0].mxu0 %v790
        %v852 = vpop.f32.mrb[0].mxu0
        %v853 = vadd.f32 0.0, %v852
        %v854 = vpop.f32.mrb[0].mxu0
        %v855 = vpop.f32.mrb[0].mxu0
        %v856 = vadd.f32 0.0, %v855
        %v857 = vpop.f32.mrb[0].mxu0
        %858 = vmatprep.mubr.bf16.mxu0 0
        %859 = vmatmul.mubr.bf16.gmra.mrb[0].mxu0 %v793
        %v860 = vpop.f32.mrb[0].mxu0
        %v861 = vadd.f32 0.0, %v860
        %v862 = vpop.f32.mrb[0].mxu0
        %v863 = vpop.f32.mrb[0].mxu0
        %v864 = vadd.f32 0.0, %v863
        %v865 = vpop.f32.mrb[0].mxu0
        %866 = vmatprep.mubr.bf16.mxu0 0
        %867 = vmatmul.mubr.bf16.gmra.mrb[0].mxu0 %v796
        %v868 = vpop.f32.mrb[0].mxu0
        %v869 = vadd.f32 0.0, %v868
        %v870 = vpop.f32.mrb[0].mxu0
        %v871 = vpop.f32.mrb[0].mxu0
        %v872 = vadd.f32 0.0, %v871
        %v873 = vpop.f32.mrb[0].mxu0
        %874 = vdwg.mxu0
        %vm875 = vcmask 523264
        %v876 = vsel %vm875, %v845, -inf
        %877 = vmax.xlane.f32.xlu0 %v876
        %v878 = vpop.xlane.xlu0 %877
        %v879 = vsel %vm875, %v848, -inf
        %880 = vmax.xlane.f32.xlu0 %v879
        %v881 = vpop.xlane.xlu0 %880
        %v882 = vsel %vm875, %v853, -inf
        %883 = vmax.xlane.f32.xlu0 %v882
        %v884 = vpop.xlane.xlu0 %883
        %v885 = vsel %vm875, %v856, -inf
        %886 = vmax.xlane.f32.xlu0 %v885
        %v887 = vpop.xlane.xlu0 %886
        %v888 = vsel %vm875, %v861, -inf
        %889 = vmax.xlane.f32.xlu0 %v888
        %v890 = vpop.xlane.xlu0 %889
        %v891 = vsel %vm875, %v864, -inf
        %892 = vmax.xlane.f32.xlu0 %v891
        %v893 = vpop.xlane.xlu0 %892
        %v894 = vsel %vm875, %v869, -inf
        %895 = vmax.xlane.f32.xlu0 %v894
        %v896 = vpop.xlane.xlu0 %895
        %v897 = vsel %vm875, %v872, -inf
        %898 = vmax.xlane.f32.xlu0 %v897
        %v899 = vpop.xlane.xlu0 %898
        %v900 = vsub.f32 %v845, %v878
        %v901 = vsub.f32 %v848, %v881
        %v902 = vsub.f32 %v853, %v884
        %v903 = vsub.f32 %v856, %v887
        %v904 = vsub.f32 %v861, %v890
        %v905 = vsub.f32 %v864, %v893
        %v906 = vsub.f32 %v869, %v896
        %v907 = vsub.f32 %v872, %v899
        %v908 = vpack.c.bf16 %v901, %v900
        %v909 = vpack.c.bf16 %v903, %v902
        %v910 = vpack.c.bf16 %v905, %v904
        %v911 = vpack.c.bf16 %v907, %v906
        %v913 = vmul.bf16 %v908, 1069105081
        %v914 = vpow.bf16.pop %v913
        %v916 = vmul.bf16 %v909, 1069105081
        %v917 = vpow.bf16.pop %v916
        %v919 = vmul.bf16 %v910, 1069105081
        %v920 = vpow.bf16.pop %v919
        %v922 = vmul.bf16 %v911, 1069105081
        %v923 = vpow.bf16.pop %v922
        %v924 = vunpack.c.l.bf16 %v914
        %v925 = vunpack.c.h.bf16 %v914
        %v926 = vunpack.c.l.bf16 %v917
        %v927 = vunpack.c.h.bf16 %v917
        %v928 = vunpack.c.l.bf16 %v920
        %v929 = vunpack.c.h.bf16 %v920
        %v930 = vunpack.c.l.bf16 %v923
        %v931 = vunpack.c.h.bf16 %v923
        %v932 = vsel %vm875, %v924, 0.0
        %933 = vadd.xlane.f32.xlu0 %v932
        %v934 = vpop.xlane.xlu0 %933
        %v935 = vsel %vm875, %v925, 0.0
        %936 = vadd.xlane.f32.xlu0 %v935
        %v937 = vpop.xlane.xlu0 %936
        %v938 = vsel %vm875, %v926, 0.0
        %939 = vadd.xlane.f32.xlu0 %v938
        %v940 = vpop.xlane.xlu0 %939
        %v941 = vsel %vm875, %v927, 0.0
        %942 = vadd.xlane.f32.xlu0 %v941
        %v943 = vpop.xlane.xlu0 %942
        %v944 = vsel %vm875, %v928, 0.0
        %945 = vadd.xlane.f32.xlu0 %v944
        %v946 = vpop.xlane.xlu0 %945
        %v947 = vsel %vm875, %v929, 0.0
        %948 = vadd.xlane.f32.xlu0 %v947
        %v949 = vpop.xlane.xlu0 %948
        %v950 = vsel %vm875, %v930, 0.0
        %951 = vadd.xlane.f32.xlu0 %v950
        %v952 = vpop.xlane.xlu0 %951
        %v953 = vsel %vm875, %v931, 0.0
        %954 = vadd.xlane.f32.xlu0 %v953
        %v955 = vpop.xlane.xlu0 %954
        %v957 = vsel %vm875, %v914, 0
        %v960 = vsel %vm875, %v917, 0
        %v963 = vsel %vm875, %v920, 0
        %v966 = vsel %vm875, %v923, 0
        %968 = vmatprep.subr.bf16.mxu0 0
        %969 = vmatpush1.bf16.msra.mxu0 %v775
        %970 = vmatprep.subr.bf16.mxu0 0
        %971 = vmatpush1.bf16.msra.mxu0 %v778
        %972 = vmatprep.subr.bf16.mxu0 0
        %973 = vmatpush1.bf16.msra.mxu0 %v781
        %974 = vmatprep.subr.bf16.mxu0 0
        %975 = vmatpush1.bf16.msra.mxu0 %v784
        %976 = vmatprep.subr.bf16.mxu0 0
        %977 = vmatpush1.bf16.msra.mxu0 0
        %978 = vmatprep.subr.bf16.mxu0 0
        %979 = vmatpush1.bf16.msra.mxu0 0
        %980 = vmatprep.subr.bf16.mxu0 0
        %981 = vmatpush1.bf16.msra.mxu0 0
        %982 = vmatprep.subr.bf16.mxu0 0
        %983 = vmatpush1.bf16.msra.mxu0 0
        %984 = vmatprep.subr.bf16.mxu0 0
        %985 = vmatpush1.bf16.msra.mxu0 0
        %986 = vmatprep.subr.bf16.mxu0 0
        %987 = vmatpush1.bf16.msra.mxu0 0
        %988 = vmatprep.subr.bf16.mxu0 0
        %989 = vmatpush1.bf16.msra.mxu0 0
        %990 = vmatprep.subr.bf16.mxu0 0
        %991 = vmatpush1.bf16.msra.mxu0 0
        %992 = vmatprep.subr.bf16.mxu0 0
        %993 = vmatpush1.bf16.msra.mxu0 0
        %994 = vmatprep.subr.bf16.mxu0 0
        %995 = vmatpush1.bf16.msra.mxu0 0
        %996 = vmatprep.subr.bf16.mxu0 0
        %997 = vmatpush1.bf16.msra.mxu0 0
        %998 = vmatprep.subr.bf16.mxu0 0
        %999 = vmatpush1.bf16.msra.mxu0 0
        %1000 = vmatprep.mubr.bf16.mxu0 0
        %1001 = vmatmul.mubr.bf16.gmra.mrb[0].mxu0 %v957
        %v1002 = vpop.f32.mrb[0].mxu0
        %v1003 = vadd.f32 0.0, %v1002
        %v1004 = vpop.f32.mrb[0].mxu0
        %v1005 = vpop.f32.mrb[0].mxu0
        %v1006 = vadd.f32 0.0, %v1005
        %v1007 = vpop.f32.mrb[0].mxu0
        %1008 = vmatprep.mubr.bf16.mxu0 0
        %1009 = vmatmul.mubr.bf16.gmra.mrb[0].mxu0 %v960
        %v1010 = vpop.f32.mrb[0].mxu0
        %v1011 = vadd.f32 0.0, %v1010
        %v1012 = vpop.f32.mrb[0].mxu0
        %v1013 = vpop.f32.mrb[0].mxu0
        %v1014 = vadd.f32 0.0, %v1013
        %v1015 = vpop.f32.mrb[0].mxu0
        %1016 = vmatprep.mubr.bf16.mxu0 0
        %1017 = vmatmul.mubr.bf16.gmra.mrb[0].mxu0 %v963
        %v1018 = vpop.f32.mrb[0].mxu0
        %v1019 = vadd.f32 0.0, %v1018
        %v1020 = vpop.f32.mrb[0].mxu0
        %v1021 = vpop.f32.mrb[0].mxu0
        %v1022 = vadd.f32 0.0, %v1021
        %v1023 = vpop.f32.mrb[0].mxu0
        %1024 = vmatprep.mubr.bf16.mxu0 0
        %1025 = vmatmul.mubr.bf16.gmra.mrb[0].mxu0 %v966
        %v1026 = vpop.f32.mrb[0].mxu0
        %v1027 = vadd.f32 0.0, %v1026
        %v1028 = vpop.f32.mrb[0].mxu0
        %v1029 = vpop.f32.mrb[0].mxu0
        %v1030 = vadd.f32 0.0, %v1029
        %v1031 = vpop.f32.mrb[0].mxu0
        %1032 = vdwg.mxu0
        %v1033 = vrcp.pop %v934
        %v1034 = vrcp.pop %v937
        %v1035 = vrcp.pop %v940
        %v1036 = vrcp.pop %v943
        %v1037 = vrcp.pop %v946
        %v1038 = vrcp.pop %v949
        %v1039 = vrcp.pop %v952
        %v1040 = vrcp.pop %v955
        %v1041 = vmul.f32 %v1003, %v1033
        %v1042 = vmul.f32 %v1006, %v1034
        %v1043 = vmul.f32 %v1011, %v1035
        %v1044 = vmul.f32 %v1014, %v1036
        %v1045 = vmul.f32 %v1019, %v1037
        %v1046 = vmul.f32 %v1022, %v1038
        %v1047 = vmul.f32 %v1027, %v1039
        %v1048 = vmul.f32 %v1030, %v1040
        %v1049 = vpack.c.bf16 %v1042, %v1041
        %v1050 = vpack.c.bf16 %v1044, %v1043
        %v1051 = vpack.c.bf16 %v1046, %v1045
        %v1052 = vpack.c.bf16 %v1048, %v1047
        %1057 = vrot.lane.b32.xlu0 %v773, 96
        %v1058 = vpop.permute.xlu0 %1057
        %1059 = vrot.lane.b32.xlu0 %v776, 96
        %v1060 = vpop.permute.xlu0 %1059
        %1061 = vrot.lane.b32.xlu0 %v779, 96
        %v1062 = vpop.permute.xlu0 %1061
        %1063 = vrot.lane.b32.xlu0 %v782, 96
        %v1064 = vpop.permute.xlu0 %1063
        %1069 = vrot.lane.b32.xlu0 %v774, 96
        %v1070 = vpop.permute.xlu0 %1069
        %1071 = vrot.lane.b32.xlu0 %v777, 96
        %v1072 = vpop.permute.xlu0 %1071
        %1073 = vrot.lane.b32.xlu0 %v780, 96
        %v1074 = vpop.permute.xlu0 %1073
        %1075 = vrot.lane.b32.xlu0 %v783, 96
        %v1076 = vpop.permute.xlu0 %1075
        %v1078 = vsel %vm785, %v1058, 0
        %v1081 = vsel %vm785, %v1060, 0
        %v1084 = vsel %vm785, %v1062, 0
        %v1087 = vsel %vm785, %v1064, 0
        %v1090 = vsel %vm785, %v1070, 0
        %v1093 = vsel %vm785, %v1072, 0
        %v1096 = vsel %vm785, %v1074, 0
        %v1099 = vsel %vm785, %v1076, 0
        %1101 = vmatprep.subr.bf16.mxu0 0
        %1102 = vmatpush1.bf16.xpose.msra.mxu0 %v1090
        %1103 = vmatprep.subr.bf16.mxu0 0
        %1104 = vmatpush1.bf16.xpose.msra.mxu0 %v1093
        %1105 = vmatprep.subr.bf16.mxu0 0
        %1106 = vmatpush1.bf16.xpose.msra.mxu0 %v1096
        %1107 = vmatprep.subr.bf16.mxu0 0
        %1108 = vmatpush1.bf16.xpose.msra.mxu0 %v1099
        %1109 = vmatprep.subr.bf16.mxu0 0
        %1110 = vmatpush1.bf16.xpose.msra.mxu0 0
        %1111 = vmatprep.subr.bf16.mxu0 0
        %1112 = vmatpush1.bf16.xpose.msra.mxu0 0
        %1113 = vmatprep.subr.bf16.mxu0 0
        %1114 = vmatpush1.bf16.xpose.msra.mxu0 0
        %1115 = vmatprep.subr.bf16.mxu0 0
        %1116 = vmatpush1.bf16.xpose.msra.mxu0 0
        %1117 = vmatprep.subr.bf16.mxu0 0
        %1118 = vmatpush1.bf16.xpose.msra.mxu0 0
        %1119 = vmatprep.subr.bf16.mxu0 0
        %1120 = vmatpush1.bf16.xpose.msra.mxu0 0
        %1121 = vmatprep.subr.bf16.mxu0 0
        %1122 = vmatpush1.bf16.xpose.msra.mxu0 0
        %1123 = vmatprep.subr.bf16.mxu0 0
        %1124 = vmatpush1.bf16.xpose.msra.mxu0 0
        %1125 = vmatprep.subr.bf16.mxu0 0
        %1126 = vmatpush1.bf16.xpose.msra.mxu0 0
        %1127 = vmatprep.subr.bf16.mxu0 0
        %1128 = vmatpush1.bf16.xpose.msra.mxu0 0
        %1129 = vmatprep.subr.bf16.mxu0 0
        %1130 = vmatpush1.bf16.xpose.msra.mxu0 0
        %1131 = vmatprep.subr.bf16.mxu0 0
        %1132 = vmatpush1.bf16.xpose.msra.mxu0 0
        %1133 = vmatprep.mubr.bf16.mxu0 0
        %1134 = vmatmul.mubr.bf16.gmra.mrb[0].mxu0 %v1078
        %v1135 = vpop.f32.mrb[0].mxu0
        %v1136 = vadd.f32 0.0, %v1135
        %v1137 = vpop.f32.mrb[0].mxu0
        %v1138 = vpop.f32.mrb[0].mxu0
        %v1139 = vadd.f32 0.0, %v1138
        %v1140 = vpop.f32.mrb[0].mxu0
        %1141 = vmatprep.mubr.bf16.mxu0 0
        %1142 = vmatmul.mubr.bf16.gmra.mrb[0].mxu0 %v1081
        %v1143 = vpop.f32.mrb[0].mxu0
        %v1144 = vadd.f32 0.0, %v1143
        %v1145 = vpop.f32.mrb[0].mxu0
        %v1146 = vpop.f32.mrb[0].mxu0
        %v1147 = vadd.f32 0.0, %v1146
        %v1148 = vpop.f32.mrb[0].mxu0
        %1149 = vmatprep.mubr.bf16.mxu0 0
        %1150 = vmatmul.mubr.bf16.gmra.mrb[0].mxu0 %v1084
        %v1151 = vpop.f32.mrb[0].mxu0
        %v1152 = vadd.f32 0.0, %v1151
        %v1153 = vpop.f32.mrb[0].mxu0
        %v1154 = vpop.f32.mrb[0].mxu0
        %v1155 = vadd.f32 0.0, %v1154
        %v1156 = vpop.f32.mrb[0].mxu0
        %1157 = vmatprep.mubr.bf16.mxu0 0
        %1158 = vmatmul.mubr.bf16.gmra.mrb[0].mxu0 %v1087
        %v1159 = vpop.f32.mrb[0].mxu0
        %v1160 = vadd.f32 0.0, %v1159
        %v1161 = vpop.f32.mrb[0].mxu0
        %v1162 = vpop.f32.mrb[0].mxu0
        %v1163 = vadd.f32 0.0, %v1162
        %v1164 = vpop.f32.mrb[0].mxu0
        %1165 = vdwg.mxu0
        %v1166 = vsel %vm875, %v1136, -inf
        %1167 = vmax.xlane.f32.xlu0 %v1166
        %v1168 = vpop.xlane.xlu0 %1167
        %v1169 = vsel %vm875, %v1139, -inf
        %1170 = vmax.xlane.f32.xlu0 %v1169
        %v1171 = vpop.xlane.xlu0 %1170
        %v1172 = vsel %vm875, %v1144, -inf
        %1173 = vmax.xlane.f32.xlu0 %v1172
        %v1174 = vpop.xlane.xlu0 %1173
        %v1175 = vsel %vm875, %v1147, -inf
        %1176 = vmax.xlane.f32.xlu0 %v1175
        %v1177 = vpop.xlane.xlu0 %1176
        %v1178 = vsel %vm875, %v1152, -inf
        %1179 = vmax.xlane.f32.xlu0 %v1178
        %v1180 = vpop.xlane.xlu0 %1179
        %v1181 = vsel %vm875, %v1155, -inf
        %1182 = vmax.xlane.f32.xlu0 %v1181
        %v1183 = vpop.xlane.xlu0 %1182
        %v1184 = vsel %vm875, %v1160, -inf
        %1185 = vmax.xlane.f32.xlu0 %v1184
        %v1186 = vpop.xlane.xlu0 %1185
        %v1187 = vsel %vm875, %v1163, -inf
        %1188 = vmax.xlane.f32.xlu0 %v1187
        %v1189 = vpop.xlane.xlu0 %1188
        %v1190 = vsub.f32 %v1136, %v1168
        %v1191 = vsub.f32 %v1139, %v1171
        %v1192 = vsub.f32 %v1144, %v1174
        %v1193 = vsub.f32 %v1147, %v1177
        %v1194 = vsub.f32 %v1152, %v1180
        %v1195 = vsub.f32 %v1155, %v1183
        %v1196 = vsub.f32 %v1160, %v1186
        %v1197 = vsub.f32 %v1163, %v1189
        %v1198 = vpack.c.bf16 %v1191, %v1190
        %v1199 = vpack.c.bf16 %v1193, %v1192
        %v1200 = vpack.c.bf16 %v1195, %v1194
        %v1201 = vpack.c.bf16 %v1197, %v1196
        %v1203 = vmul.bf16 %v1198, 1069105081
        %v1204 = vpow.bf16.pop %v1203
        %v1206 = vmul.bf16 %v1199, 1069105081
        %v1207 = vpow.bf16.pop %v1206
        %v1209 = vmul.bf16 %v1200, 1069105081
        %v1210 = vpow.bf16.pop %v1209
        %v1212 = vmul.bf16 %v1201, 1069105081
        %v1213 = vpow.bf16.pop %v1212
        %v1214 = vunpack.c.l.bf16 %v1204
        %v1215 = vunpack.c.h.bf16 %v1204
        %v1216 = vunpack.c.l.bf16 %v1207
        %v1217 = vunpack.c.h.bf16 %v1207
        %v1218 = vunpack.c.l.bf16 %v1210
        %v1219 = vunpack.c.h.bf16 %v1210
        %v1220 = vunpack.c.l.bf16 %v1213
        %v1221 = vunpack.c.h.bf16 %v1213
        %v1222 = vsel %vm875, %v1214, 0.0
        %1223 = vadd.xlane.f32.xlu0 %v1222
        %v1224 = vpop.xlane.xlu0 %1223
        %v1225 = vsel %vm875, %v1215, 0.0
        %1226 = vadd.xlane.f32.xlu0 %v1225
        %v1227 = vpop.xlane.xlu0 %1226
        %v1228 = vsel %vm875, %v1216, 0.0
        %1229 = vadd.xlane.f32.xlu0 %v1228
        %v1230 = vpop.xlane.xlu0 %1229
        %v1231 = vsel %vm875, %v1217, 0.0
        %1232 = vadd.xlane.f32.xlu0 %v1231
        %v1233 = vpop.xlane.xlu0 %1232
        %v1234 = vsel %vm875, %v1218, 0.0
        %1235 = vadd.xlane.f32.xlu0 %v1234
        %v1236 = vpop.xlane.xlu0 %1235
        %v1237 = vsel %vm875, %v1219, 0.0
        %1238 = vadd.xlane.f32.xlu0 %v1237
        %v1239 = vpop.xlane.xlu0 %1238
        %v1240 = vsel %vm875, %v1220, 0.0
        %1241 = vadd.xlane.f32.xlu0 %v1240
        %v1242 = vpop.xlane.xlu0 %1241
        %v1243 = vsel %vm875, %v1221, 0.0
        %1244 = vadd.xlane.f32.xlu0 %v1243
        %v1245 = vpop.xlane.xlu0 %1244
        %1250 = vrot.lane.b32.xlu0 %v775, 96
        %v1251 = vpop.permute.xlu0 %1250
        %1252 = vrot.lane.b32.xlu0 %v778, 96
        %v1253 = vpop.permute.xlu0 %1252
        %1254 = vrot.lane.b32.xlu0 %v781, 96
        %v1255 = vpop.permute.xlu0 %1254
        %1256 = vrot.lane.b32.xlu0 %v784, 96
        %v1257 = vpop.permute.xlu0 %1256
        %v1263 = vsel %vm875, %v1204, 0
        %v1266 = vsel %vm875, %v1207, 0
        %v1269 = vsel %vm875, %v1210, 0
        %v1272 = vsel %vm875, %v1213, 0
        %1274 = vmatprep.subr.bf16.mxu0 0
        %1275 = vmatpush1.bf16.msra.mxu0 %v1251
        %1276 = vmatprep.subr.bf16.mxu0 0
        %1277 = vmatpush1.bf16.msra.mxu0 %v1253
        %1278 = vmatprep.subr.bf16.mxu0 0
        %1279 = vmatpush1.bf16.msra.mxu0 %v1255
        %1280 = vmatprep.subr.bf16.mxu0 0
        %1281 = vmatpush1.bf16.msra.mxu0 %v1257
        %1282 = vmatprep.subr.bf16.mxu0 0
        %1283 = vmatpush1.bf16.msra.mxu0 0
        %1284 = vmatprep.subr.bf16.mxu0 0
        %1285 = vmatpush1.bf16.msra.mxu0 0
        %1286 = vmatprep.subr.bf16.mxu0 0
        %1287 = vmatpush1.bf16.msra.mxu0 0
        %1288 = vmatprep.subr.bf16.mxu0 0
        %1289 = vmatpush1.bf16.msra.mxu0 0
        %1290 = vmatprep.subr.bf16.mxu0 0
        %1291 = vmatpush1.bf16.msra.mxu0 0
        %1292 = vmatprep.subr.bf16.mxu0 0
        %1293 = vmatpush1.bf16.msra.mxu0 0
        %1294 = vmatprep.subr.bf16.mxu0 0
        %1295 = vmatpush1.bf16.msra.mxu0 0
        %1296 = vmatprep.subr.bf16.mxu0 0
        %1297 = vmatpush1.bf16.msra.mxu0 0
        %1298 = vmatprep.subr.bf16.mxu0 0
        %1299 = vmatpush1.bf16.msra.mxu0 0
        %1300 = vmatprep.subr.bf16.mxu0 0
        %1301 = vmatpush1.bf16.msra.mxu0 0
        %1302 = vmatprep.subr.bf16.mxu0 0
        %1303 = vmatpush1.bf16.msra.mxu0 0
        %1304 = vmatprep.subr.bf16.mxu0 0
        %1305 = vmatpush1.bf16.msra.mxu0 0
        %1306 = vmatprep.mubr.bf16.mxu0 0
        %1307 = vmatmul.mubr.bf16.gmra.mrb[0].mxu0 %v1263
        %v1308 = vpop.f32.mrb[0].mxu0
        %v1309 = vadd.f32 0.0, %v1308
        %v1310 = vpop.f32.mrb[0].mxu0
        %v1311 = vpop.f32.mrb[0].mxu0
        %v1312 = vadd.f32 0.0, %v1311
        %v1313 = vpop.f32.mrb[0].mxu0
        %1314 = vmatprep.mubr.bf16.mxu0 0
        %1315 = vmatmul.mubr.bf16.gmra.mrb[0].mxu0 %v1266
        %v1316 = vpop.f32.mrb[0].mxu0
        %v1317 = vadd.f32 0.0, %v1316
        %v1318 = vpop.f32.mrb[0].mxu0
        %v1319 = vpop.f32.mrb[0].mxu0
        %v1320 = vadd.f32 0.0, %v1319
        %v1321 = vpop.f32.mrb[0].mxu0
        %1322 = vmatprep.mubr.bf16.mxu0 0
        %1323 = vmatmul.mubr.bf16.gmra.mrb[0].mxu0 %v1269
        %v1324 = vpop.f32.mrb[0].mxu0
        %v1325 = vadd.f32 0.0, %v1324
        %v1326 = vpop.f32.mrb[0].mxu0
        %v1327 = vpop.f32.mrb[0].mxu0
        %v1328 = vadd.f32 0.0, %v1327
        %v1329 = vpop.f32.mrb[0].mxu0
        %1330 = vmatprep.mubr.bf16.mxu0 0
        %1331 = vmatmul.mubr.bf16.gmra.mrb[0].mxu0 %v1272
        %v1332 = vpop.f32.mrb[0].mxu0
        %v1333 = vadd.f32 0.0, %v1332
        %v1334 = vpop.f32.mrb[0].mxu0
        %v1335 = vpop.f32.mrb[0].mxu0
        %v1336 = vadd.f32 0.0, %v1335
        %v1337 = vpop.f32.mrb[0].mxu0
        %1338 = vdwg.mxu0
        %v1339 = vrcp.pop %v1224
        %v1340 = vrcp.pop %v1227
        %v1341 = vrcp.pop %v1230
        %v1342 = vrcp.pop %v1233
        %v1343 = vrcp.pop %v1236
        %v1344 = vrcp.pop %v1239
        %v1345 = vrcp.pop %v1242
        %v1346 = vrcp.pop %v1245
        %v1347 = vmul.f32 %v1309, %v1339
        %v1348 = vmul.f32 %v1312, %v1340
        %v1349 = vmul.f32 %v1317, %v1341
        %v1350 = vmul.f32 %v1320, %v1342
        %v1351 = vmul.f32 %v1325, %v1343
        %v1352 = vmul.f32 %v1328, %v1344
        %v1353 = vmul.f32 %v1333, %v1345
        %v1354 = vmul.f32 %v1336, %v1346
        %v1355 = vpack.c.bf16 %v1348, %v1347
        %v1356 = vpack.c.bf16 %v1350, %v1349
        %v1357 = vpack.c.bf16 %v1352, %v1351
        %v1358 = vpack.c.bf16 %v1354, %v1353
        %1359 = vrot.lane.b32.xlu0 %v773, 64
        %v1360 = vpop.permute.xlu0 %1359
        %1361 = vrot.lane.b32.xlu0 %v776, 64
        %v1362 = vpop.permute.xlu0 %1361
        %1363 = vrot.lane.b32.xlu0 %v779, 64
        %v1364 = vpop.permute.xlu0 %1363
        %1365 = vrot.lane.b32.xlu0 %v782, 64
        %v1366 = vpop.permute.xlu0 %1365
        %1367 = vrot.lane.b32.xlu0 %v774, 64
        %v1368 = vpop.permute.xlu0 %1367
        %1369 = vrot.lane.b32.xlu0 %v777, 64
        %v1370 = vpop.permute.xlu0 %1369
        %1371 = vrot.lane.b32.xlu0 %v780, 64
        %v1372 = vpop.permute.xlu0 %1371
        %1373 = vrot.lane.b32.xlu0 %v783, 64
        %v1374 = vpop.permute.xlu0 %1373
        %v1376 = vsel %vm785, %v1360, 0
        %v1379 = vsel %vm785, %v1362, 0
        %v1382 = vsel %vm785, %v1364, 0
        %v1385 = vsel %vm785, %v1366, 0
        %v1388 = vsel %vm785, %v1368, 0
        %v1391 = vsel %vm785, %v1370, 0
        %v1394 = vsel %vm785, %v1372, 0
        %v1397 = vsel %vm785, %v1374, 0
        %1399 = vmatprep.subr.bf16.mxu0 0
        %1400 = vmatpush1.bf16.xpose.msra.mxu0 %v1388
        %1401 = vmatprep.subr.bf16.mxu0 0
        %1402 = vmatpush1.bf16.xpose.msra.mxu0 %v1391
        %1403 = vmatprep.subr.bf16.mxu0 0
        %1404 = vmatpush1.bf16.xpose.msra.mxu0 %v1394
        %1405 = vmatprep.subr.bf16.mxu0 0
        %1406 = vmatpush1.bf16.xpose.msra.mxu0 %v1397
        %1407 = vmatprep.subr.bf16.mxu0 0
        %1408 = vmatpush1.bf16.xpose.msra.mxu0 0
        %1409 = vmatprep.subr.bf16.mxu0 0
        %1410 = vmatpush1.bf16.xpose.msra.mxu0 0
        %1411 = vmatprep.subr.bf16.mxu0 0
        %1412 = vmatpush1.bf16.xpose.msra.mxu0 0
        %1413 = vmatprep.subr.bf16.mxu0 0
        %1414 = vmatpush1.bf16.xpose.msra.mxu0 0
        %1415 = vmatprep.subr.bf16.mxu0 0
        %1416 = vmatpush1.bf16.xpose.msra.mxu0 0
        %1417 = vmatprep.subr.bf16.mxu0 0
        %1418 = vmatpush1.bf16.xpose.msra.mxu0 0
        %1419 = vmatprep.subr.bf16.mxu0 0
        %1420 = vmatpush1.bf16.xpose.msra.mxu0 0
        %1421 = vmatprep.subr.bf16.mxu0 0
        %1422 = vmatpush1.bf16.xpose.msra.mxu0 0
        %1423 = vmatprep.subr.bf16.mxu0 0
        %1424 = vmatpush1.bf16.xpose.msra.mxu0 0
        %1425 = vmatprep.subr.bf16.mxu0 0
        %1426 = vmatpush1.bf16.xpose.msra.mxu0 0
        %1427 = vmatprep.subr.bf16.mxu0 0
        %1428 = vmatpush1.bf16.xpose.msra.mxu0 0
        %1429 = vmatprep.subr.bf16.mxu0 0
        %1430 = vmatpush1.bf16.xpose.msra.mxu0 0
        %1431 = vmatprep.mubr.bf16.mxu0 0
        %1432 = vmatmul.mubr.bf16.gmra.mrb[0].mxu0 %v1376
        %v1433 = vpop.f32.mrb[0].mxu0
        %v1434 = vadd.f32 0.0, %v1433
        %v1435 = vpop.f32.mrb[0].mxu0
        %v1436 = vpop.f32.mrb[0].mxu0
        %v1437 = vadd.f32 0.0, %v1436
        %v1438 = vpop.f32.mrb[0].mxu0
        %1439 = vmatprep.mubr.bf16.mxu0 0
        %1440 = vmatmul.mubr.bf16.gmra.mrb[0].mxu0 %v1379
        %v1441 = vpop.f32.mrb[0].mxu0
        %v1442 = vadd.f32 0.0, %v1441
        %v1443 = vpop.f32.mrb[0].mxu0
        %v1444 = vpop.f32.mrb[0].mxu0
        %v1445 = vadd.f32 0.0, %v1444
        %v1446 = vpop.f32.mrb[0].mxu0
        %1447 = vmatprep.mubr.bf16.mxu0 0
        %1448 = vmatmul.mubr.bf16.gmra.mrb[0].mxu0 %v1382
        %v1449 = vpop.f32.mrb[0].mxu0
        %v1450 = vadd.f32 0.0, %v1449
        %v1451 = vpop.f32.mrb[0].mxu0
        %v1452 = vpop.f32.mrb[0].mxu0
        %v1453 = vadd.f32 0.0, %v1452
        %v1454 = vpop.f32.mrb[0].mxu0
        %1455 = vmatprep.mubr.bf16.mxu0 0
        %1456 = vmatmul.mubr.bf16.gmra.mrb[0].mxu0 %v1385
        %v1457 = vpop.f32.mrb[0].mxu0
        %v1458 = vadd.f32 0.0, %v1457
        %v1459 = vpop.f32.mrb[0].mxu0
        %v1460 = vpop.f32.mrb[0].mxu0
        %v1461 = vadd.f32 0.0, %v1460
        %v1462 = vpop.f32.mrb[0].mxu0
        %1463 = vdwg.mxu0
        %v1464 = vsel %vm875, %v1434, -inf
        %1465 = vmax.xlane.f32.xlu0 %v1464
        %v1466 = vpop.xlane.xlu0 %1465
        %v1467 = vsel %vm875, %v1437, -inf
        %1468 = vmax.xlane.f32.xlu0 %v1467
        %v1469 = vpop.xlane.xlu0 %1468
        %v1470 = vsel %vm875, %v1442, -inf
        %1471 = vmax.xlane.f32.xlu0 %v1470
        %v1472 = vpop.xlane.xlu0 %1471
        %v1473 = vsel %vm875, %v1445, -inf
        %1474 = vmax.xlane.f32.xlu0 %v1473
        %v1475 = vpop.xlane.xlu0 %1474
        %v1476 = vsel %vm875, %v1450, -inf
        %1477 = vmax.xlane.f32.xlu0 %v1476
        %v1478 = vpop.xlane.xlu0 %1477
        %v1479 = vsel %vm875, %v1453, -inf
        %1480 = vmax.xlane.f32.xlu0 %v1479
        %v1481 = vpop.xlane.xlu0 %1480
        %v1482 = vsel %vm875, %v1458, -inf
        %1483 = vmax.xlane.f32.xlu0 %v1482
        %v1484 = vpop.xlane.xlu0 %1483
        %v1485 = vsel %vm875, %v1461, -inf
        %1486 = vmax.xlane.f32.xlu0 %v1485
        %v1487 = vpop.xlane.xlu0 %1486
        %v1488 = vsub.f32 %v1434, %v1466
        %v1489 = vsub.f32 %v1437, %v1469
        %v1490 = vsub.f32 %v1442, %v1472
        %v1491 = vsub.f32 %v1445, %v1475
        %v1492 = vsub.f32 %v1450, %v1478
        %v1493 = vsub.f32 %v1453, %v1481
        %v1494 = vsub.f32 %v1458, %v1484
        %v1495 = vsub.f32 %v1461, %v1487
        %v1496 = vpack.c.bf16 %v1489, %v1488
        %v1497 = vpack.c.bf16 %v1491, %v1490
        %v1498 = vpack.c.bf16 %v1493, %v1492
        %v1499 = vpack.c.bf16 %v1495, %v1494
        %v1501 = vmul.bf16 %v1496, 1069105081
        %v1502 = vpow.bf16.pop %v1501
        %v1504 = vmul.bf16 %v1497, 1069105081
        %v1505 = vpow.bf16.pop %v1504
        %v1507 = vmul.bf16 %v1498, 1069105081
        %v1508 = vpow.bf16.pop %v1507
        %v1510 = vmul.bf16 %v1499, 1069105081
        %v1511 = vpow.bf16.pop %v1510
        %v1512 = vunpack.c.l.bf16 %v1502
        %v1513 = vunpack.c.h.bf16 %v1502
        %v1514 = vunpack.c.l.bf16 %v1505
        %v1515 = vunpack.c.h.bf16 %v1505
        %v1516 = vunpack.c.l.bf16 %v1508
        %v1517 = vunpack.c.h.bf16 %v1508
        %v1518 = vunpack.c.l.bf16 %v1511
        %v1519 = vunpack.c.h.bf16 %v1511
        %v1520 = vsel %vm875, %v1512, 0.0
        %1521 = vadd.xlane.f32.xlu0 %v1520
        %v1522 = vpop.xlane.xlu0 %1521
        %v1523 = vsel %vm875, %v1513, 0.0
        %1524 = vadd.xlane.f32.xlu0 %v1523
        %v1525 = vpop.xlane.xlu0 %1524
        %v1526 = vsel %vm875, %v1514, 0.0
        %1527 = vadd.xlane.f32.xlu0 %v1526
        %v1528 = vpop.xlane.xlu0 %1527
        %v1529 = vsel %vm875, %v1515, 0.0
        %1530 = vadd.xlane.f32.xlu0 %v1529
        %v1531 = vpop.xlane.xlu0 %1530
        %v1532 = vsel %vm875, %v1516, 0.0
        %1533 = vadd.xlane.f32.xlu0 %v1532
        %v1534 = vpop.xlane.xlu0 %1533
        %v1535 = vsel %vm875, %v1517, 0.0
        %1536 = vadd.xlane.f32.xlu0 %v1535
        %v1537 = vpop.xlane.xlu0 %1536
        %v1538 = vsel %vm875, %v1518, 0.0
        %1539 = vadd.xlane.f32.xlu0 %v1538
        %v1540 = vpop.xlane.xlu0 %1539
        %v1541 = vsel %vm875, %v1519, 0.0
        %1542 = vadd.xlane.f32.xlu0 %v1541
        %v1543 = vpop.xlane.xlu0 %1542
        %1544 = vrot.lane.b32.xlu0 %v775, 64
        %v1545 = vpop.permute.xlu0 %1544
        %1546 = vrot.lane.b32.xlu0 %v778, 64
        %v1547 = vpop.permute.xlu0 %1546
        %1548 = vrot.lane.b32.xlu0 %v781, 64
        %v1549 = vpop.permute.xlu0 %1548
        %1550 = vrot.lane.b32.xlu0 %v784, 64
        %v1551 = vpop.permute.xlu0 %1550
        %v1557 = vsel %vm875, %v1502, 0
        %v1560 = vsel %vm875, %v1505, 0
        %v1563 = vsel %vm875, %v1508, 0
        %v1566 = vsel %vm875, %v1511, 0
        %1568 = vmatprep.subr.bf16.mxu0 0
        %1569 = vmatpush1.bf16.msra.mxu0 %v1545
        %1570 = vmatprep.subr.bf16.mxu0 0
        %1571 = vmatpush1.bf16.msra.mxu0 %v1547
        %1572 = vmatprep.subr.bf16.mxu0 0
        %1573 = vmatpush1.bf16.msra.mxu0 %v1549
        %1574 = vmatprep.subr.bf16.mxu0 0
        %1575 = vmatpush1.bf16.msra.mxu0 %v1551
        %1576 = vmatprep.subr.bf16.mxu0 0
        %1577 = vmatpush1.bf16.msra.mxu0 0
        %1578 = vmatprep.subr.bf16.mxu0 0
        %1579 = vmatpush1.bf16.msra.mxu0 0
        %1580 = vmatprep.subr.bf16.mxu0 0
        %1581 = vmatpush1.bf16.msra.mxu0 0
        %1582 = vmatprep.subr.bf16.mxu0 0
        %1583 = vmatpush1.bf16.msra.mxu0 0
        %1584 = vmatprep.subr.bf16.mxu0 0
        %1585 = vmatpush1.bf16.msra.mxu0 0
        %1586 = vmatprep.subr.bf16.mxu0 0
        %1587 = vmatpush1.bf16.msra.mxu0 0
        %1588 = vmatprep.subr.bf16.mxu0 0
        %1589 = vmatpush1.bf16.msra.mxu0 0
        %1590 = vmatprep.subr.bf16.mxu0 0
        %1591 = vmatpush1.bf16.msra.mxu0 0
        %1592 = vmatprep.subr.bf16.mxu0 0
        %1593 = vmatpush1.bf16.msra.mxu0 0
        %1594 = vmatprep.subr.bf16.mxu0 0
        %1595 = vmatpush1.bf16.msra.mxu0 0
        %1596 = vmatprep.subr.bf16.mxu0 0
        %1597 = vmatpush1.bf16.msra.mxu0 0
        %1598 = vmatprep.subr.bf16.mxu0 0
        %1599 = vmatpush1.bf16.msra.mxu0 0
        %1600 = vmatprep.mubr.bf16.mxu0 0
        %1601 = vmatmul.mubr.bf16.gmra.mrb[0].mxu0 %v1557
        %v1602 = vpop.f32.mrb[0].mxu0
        %v1603 = vadd.f32 0.0, %v1602
        %v1604 = vpop.f32.mrb[0].mxu0
        %v1605 = vpop.f32.mrb[0].mxu0
        %v1606 = vadd.f32 0.0, %v1605
        %v1607 = vpop.f32.mrb[0].mxu0
        %1608 = vmatprep.mubr.bf16.mxu0 0
        %1609 = vmatmul.mubr.bf16.gmra.mrb[0].mxu0 %v1560
        %v1610 = vpop.f32.mrb[0].mxu0
        %v1611 = vadd.f32 0.0, %v1610
        %v1612 = vpop.f32.mrb[0].mxu0
        %v1613 = vpop.f32.mrb[0].mxu0
        %v1614 = vadd.f32 0.0, %v1613
        %v1615 = vpop.f32.mrb[0].mxu0
        %1616 = vmatprep.mubr.bf16.mxu0 0
        %1617 = vmatmul.mubr.bf16.gmra.mrb[0].mxu0 %v1563
        %v1618 = vpop.f32.mrb[0].mxu0
        %v1619 = vadd.f32 0.0, %v1618
        %v1620 = vpop.f32.mrb[0].mxu0
        %v1621 = vpop.f32.mrb[0].mxu0
        %v1622 = vadd.f32 0.0, %v1621
        %v1623 = vpop.f32.mrb[0].mxu0
        %1624 = vmatprep.mubr.bf16.mxu0 0
        %1625 = vmatmul.mubr.bf16.gmra.mrb[0].mxu0 %v1566
        %v1626 = vpop.f32.mrb[0].mxu0
        %v1627 = vadd.f32 0.0, %v1626
        %v1628 = vpop.f32.mrb[0].mxu0
        %v1629 = vpop.f32.mrb[0].mxu0
        %v1630 = vadd.f32 0.0, %v1629
        %v1631 = vpop.f32.mrb[0].mxu0
        %1632 = vdwg.mxu0
        %v1633 = vrcp.pop %v1522
        %v1634 = vrcp.pop %v1525
        %v1635 = vrcp.pop %v1528
        %v1636 = vrcp.pop %v1531
        %v1637 = vrcp.pop %v1534
        %v1638 = vrcp.pop %v1537
        %v1639 = vrcp.pop %v1540
        %v1640 = vrcp.pop %v1543
        %v1641 = vmul.f32 %v1603, %v1633
        %v1642 = vmul.f32 %v1606, %v1634
        %v1643 = vmul.f32 %v1611, %v1635
        %v1644 = vmul.f32 %v1614, %v1636
        %v1645 = vmul.f32 %v1619, %v1637
        %v1646 = vmul.f32 %v1622, %v1638
        %v1647 = vmul.f32 %v1627, %v1639
        %v1648 = vmul.f32 %v1630, %v1640
        %v1649 = vpack.c.bf16 %v1642, %v1641
        %v1650 = vpack.c.bf16 %v1644, %v1643
        %v1651 = vpack.c.bf16 %v1646, %v1645
        %v1652 = vpack.c.bf16 %v1648, %v1647
        %1653 = vrot.lane.b32.xlu0 %v773, 32
        %v1654 = vpop.permute.xlu0 %1653
        %1655 = vrot.lane.b32.xlu0 %v776, 32
        %v1656 = vpop.permute.xlu0 %1655
        %1657 = vrot.lane.b32.xlu0 %v779, 32
        %v1658 = vpop.permute.xlu0 %1657
        %1659 = vrot.lane.b32.xlu0 %v782, 32
        %v1660 = vpop.permute.xlu0 %1659
        %1661 = vrot.lane.b32.xlu0 %v774, 32
        %v1662 = vpop.permute.xlu0 %1661
        %1663 = vrot.lane.b32.xlu0 %v777, 32
        %v1664 = vpop.permute.xlu0 %1663
        %1665 = vrot.lane.b32.xlu0 %v780, 32
        %v1666 = vpop.permute.xlu0 %1665
        %1667 = vrot.lane.b32.xlu0 %v783, 32
        %v1668 = vpop.permute.xlu0 %1667
        %v1670 = vsel %vm785, %v1654, 0
        %v1673 = vsel %vm785, %v1656, 0
        %v1676 = vsel %vm785, %v1658, 0
        %v1679 = vsel %vm785, %v1660, 0
        %v1682 = vsel %vm785, %v1662, 0
        %v1685 = vsel %vm785, %v1664, 0
        %v1688 = vsel %vm785, %v1666, 0
        %v1691 = vsel %vm785, %v1668, 0
        %1693 = vmatprep.subr.bf16.mxu0 0
        %1694 = vmatpush1.bf16.xpose.msra.mxu0 %v1682
        %1695 = vmatprep.subr.bf16.mxu0 0
        %1696 = vmatpush1.bf16.xpose.msra.mxu0 %v1685
        %1697 = vmatprep.subr.bf16.mxu0 0
        %1698 = vmatpush1.bf16.xpose.msra.mxu0 %v1688
        %1699 = vmatprep.subr.bf16.mxu0 0
        %1700 = vmatpush1.bf16.xpose.msra.mxu0 %v1691
        %1701 = vmatprep.subr.bf16.mxu0 0
        %1702 = vmatpush1.bf16.xpose.msra.mxu0 0
        %1703 = vmatprep.subr.bf16.mxu0 0
        %1704 = vmatpush1.bf16.xpose.msra.mxu0 0
        %1705 = vmatprep.subr.bf16.mxu0 0
        %1706 = vmatpush1.bf16.xpose.msra.mxu0 0
        %1707 = vmatprep.subr.bf16.mxu0 0
        %1708 = vmatpush1.bf16.xpose.msra.mxu0 0
        %1709 = vmatprep.subr.bf16.mxu0 0
        %1710 = vmatpush1.bf16.xpose.msra.mxu0 0
        %1711 = vmatprep.subr.bf16.mxu0 0
        %1712 = vmatpush1.bf16.xpose.msra.mxu0 0
        %1713 = vmatprep.subr.bf16.mxu0 0
        %1714 = vmatpush1.bf16.xpose.msra.mxu0 0
        %1715 = vmatprep.subr.bf16.mxu0 0
        %1716 = vmatpush1.bf16.xpose.msra.mxu0 0
        %1717 = vmatprep.subr.bf16.mxu0 0
        %1718 = vmatpush1.bf16.xpose.msra.mxu0 0
        %1719 = vmatprep.subr.bf16.mxu0 0
        %1720 = vmatpush1.bf16.xpose.msra.mxu0 0
        %1721 = vmatprep.subr.bf16.mxu0 0
        %1722 = vmatpush1.bf16.xpose.msra.mxu0 0
        %1723 = vmatprep.subr.bf16.mxu0 0
        %1724 = vmatpush1.bf16.xpose.msra.mxu0 0
        %1725 = vmatprep.mubr.bf16.mxu0 0
        %1726 = vmatmul.mubr.bf16.gmra.mrb[0].mxu0 %v1670
        %v1727 = vpop.f32.mrb[0].mxu0
        %v1728 = vadd.f32 0.0, %v1727
        %v1729 = vpop.f32.mrb[0].mxu0
        %v1730 = vpop.f32.mrb[0].mxu0
        %v1731 = vadd.f32 0.0, %v1730
        %v1732 = vpop.f32.mrb[0].mxu0
        %1733 = vmatprep.mubr.bf16.mxu0 0
        %1734 = vmatmul.mubr.bf16.gmra.mrb[0].mxu0 %v1673
        %v1735 = vpop.f32.mrb[0].mxu0
        %v1736 = vadd.f32 0.0, %v1735
        %v1737 = vpop.f32.mrb[0].mxu0
        %v1738 = vpop.f32.mrb[0].mxu0
        %v1739 = vadd.f32 0.0, %v1738
        %v1740 = vpop.f32.mrb[0].mxu0
        %1741 = vmatprep.mubr.bf16.mxu0 0
        %1742 = vmatmul.mubr.bf16.gmra.mrb[0].mxu0 %v1676
        %v1743 = vpop.f32.mrb[0].mxu0
        %v1744 = vadd.f32 0.0, %v1743
        %v1745 = vpop.f32.mrb[0].mxu0
        %v1746 = vpop.f32.mrb[0].mxu0
        %v1747 = vadd.f32 0.0, %v1746
        %v1748 = vpop.f32.mrb[0].mxu0
        %1749 = vmatprep.mubr.bf16.mxu0 0
        %1750 = vmatmul.mubr.bf16.gmra.mrb[0].mxu0 %v1679
        %v1751 = vpop.f32.mrb[0].mxu0
        %v1752 = vadd.f32 0.0, %v1751
        %v1753 = vpop.f32.mrb[0].mxu0
        %v1754 = vpop.f32.mrb[0].mxu0
        %v1755 = vadd.f32 0.0, %v1754
        %v1756 = vpop.f32.mrb[0].mxu0
        %1757 = vdwg.mxu0
        %v1758 = vsel %vm875, %v1728, -inf
        %1759 = vmax.xlane.f32.xlu0 %v1758
        %v1760 = vpop.xlane.xlu0 %1759
        %v1761 = vsel %vm875, %v1731, -inf
        %1762 = vmax.xlane.f32.xlu0 %v1761
        %v1763 = vpop.xlane.xlu0 %1762
        %v1764 = vsel %vm875, %v1736, -inf
        %1765 = vmax.xlane.f32.xlu0 %v1764
        %v1766 = vpop.xlane.xlu0 %1765
        %v1767 = vsel %vm875, %v1739, -inf
        %1768 = vmax.xlane.f32.xlu0 %v1767
        %v1769 = vpop.xlane.xlu0 %1768
        %v1770 = vsel %vm875, %v1744, -inf
        %1771 = vmax.xlane.f32.xlu0 %v1770
        %v1772 = vpop.xlane.xlu0 %1771
        %v1773 = vsel %vm875, %v1747, -inf
        %1774 = vmax.xlane.f32.xlu0 %v1773
        %v1775 = vpop.xlane.xlu0 %1774
        %v1776 = vsel %vm875, %v1752, -inf
        %1777 = vmax.xlane.f32.xlu0 %v1776
        %v1778 = vpop.xlane.xlu0 %1777
        %v1779 = vsel %vm875, %v1755, -inf
        %1780 = vmax.xlane.f32.xlu0 %v1779
        %v1781 = vpop.xlane.xlu0 %1780
        %v1782 = vsub.f32 %v1728, %v1760
        %v1783 = vsub.f32 %v1731, %v1763
        %v1784 = vsub.f32 %v1736, %v1766
        %v1785 = vsub.f32 %v1739, %v1769
        %v1786 = vsub.f32 %v1744, %v1772
        %v1787 = vsub.f32 %v1747, %v1775
        %v1788 = vsub.f32 %v1752, %v1778
        %v1789 = vsub.f32 %v1755, %v1781
        %v1790 = vpack.c.bf16 %v1783, %v1782
        %v1791 = vpack.c.bf16 %v1785, %v1784
        %v1792 = vpack.c.bf16 %v1787, %v1786
        %v1793 = vpack.c.bf16 %v1789, %v1788
        %v1795 = vmul.bf16 %v1790, 1069105081
        %v1796 = vpow.bf16.pop %v1795
        %v1798 = vmul.bf16 %v1791, 1069105081
        %v1799 = vpow.bf16.pop %v1798
        %v1801 = vmul.bf16 %v1792, 1069105081
        %v1802 = vpow.bf16.pop %v1801
        %v1804 = vmul.bf16 %v1793, 1069105081
        %v1805 = vpow.bf16.pop %v1804
        %v1806 = vunpack.c.l.bf16 %v1796
        %v1807 = vunpack.c.h.bf16 %v1796
        %v1808 = vunpack.c.l.bf16 %v1799
        %v1809 = vunpack.c.h.bf16 %v1799
        %v1810 = vunpack.c.l.bf16 %v1802
        %v1811 = vunpack.c.h.bf16 %v1802
        %v1812 = vunpack.c.l.bf16 %v1805
        %v1813 = vunpack.c.h.bf16 %v1805
        %v1814 = vsel %vm875, %v1806, 0.0
        %1815 = vadd.xlane.f32.xlu0 %v1814
        %v1816 = vpop.xlane.xlu0 %1815
        %v1817 = vsel %vm875, %v1807, 0.0
        %1818 = vadd.xlane.f32.xlu0 %v1817
        %v1819 = vpop.xlane.xlu0 %1818
        %v1820 = vsel %vm875, %v1808, 0.0
        %1821 = vadd.xlane.f32.xlu0 %v1820
        %v1822 = vpop.xlane.xlu0 %1821
        %v1823 = vsel %vm875, %v1809, 0.0
        %1824 = vadd.xlane.f32.xlu0 %v1823
        %v1825 = vpop.xlane.xlu0 %1824
        %v1826 = vsel %vm875, %v1810, 0.0
        %1827 = vadd.xlane.f32.xlu0 %v1826
        %v1828 = vpop.xlane.xlu0 %1827
        %v1829 = vsel %vm875, %v1811, 0.0
        %1830 = vadd.xlane.f32.xlu0 %v1829
        %v1831 = vpop.xlane.xlu0 %1830
        %v1832 = vsel %vm875, %v1812, 0.0
        %1833 = vadd.xlane.f32.xlu0 %v1832
        %v1834 = vpop.xlane.xlu0 %1833
        %v1835 = vsel %vm875, %v1813, 0.0
        %1836 = vadd.xlane.f32.xlu0 %v1835
        %v1837 = vpop.xlane.xlu0 %1836
        %1838 = vrot.lane.b32.xlu0 %v775, 32
        %v1839 = vpop.permute.xlu0 %1838
        %1840 = vrot.lane.b32.xlu0 %v778, 32
        %v1841 = vpop.permute.xlu0 %1840
        %1842 = vrot.lane.b32.xlu0 %v781, 32
        %v1843 = vpop.permute.xlu0 %1842
        %1844 = vrot.lane.b32.xlu0 %v784, 32
        %v1845 = vpop.permute.xlu0 %1844
        %v1851 = vsel %vm875, %v1796, 0
        %v1854 = vsel %vm875, %v1799, 0
        %v1857 = vsel %vm875, %v1802, 0
        %v1860 = vsel %vm875, %v1805, 0
        %1862 = vmatprep.subr.bf16.mxu0 0
        %1863 = vmatpush1.bf16.msra.mxu0 %v1839
        %1864 = vmatprep.subr.bf16.mxu0 0
        %1865 = vmatpush1.bf16.msra.mxu0 %v1841
        %1866 = vmatprep.subr.bf16.mxu0 0
        %1867 = vmatpush1.bf16.msra.mxu0 %v1843
        %1868 = vmatprep.subr.bf16.mxu0 0
        %1869 = vmatpush1.bf16.msra.mxu0 %v1845
        %1870 = vmatprep.subr.bf16.mxu0 0
        %1871 = vmatpush1.bf16.msra.mxu0 0
        %1872 = vmatprep.subr.bf16.mxu0 0
        %1873 = vmatpush1.bf16.msra.mxu0 0
        %1874 = vmatprep.subr.bf16.mxu0 0
        %1875 = vmatpush1.bf16.msra.mxu0 0
        %1876 = vmatprep.subr.bf16.mxu0 0
        %1877 = vmatpush1.bf16.msra.mxu0 0
        %1878 = vmatprep.subr.bf16.mxu0 0
        %1879 = vmatpush1.bf16.msra.mxu0 0
        %1880 = vmatprep.subr.bf16.mxu0 0
        %1881 = vmatpush1.bf16.msra.mxu0 0
        %1882 = vmatprep.subr.bf16.mxu0 0
        %1883 = vmatpush1.bf16.msra.mxu0 0
        %1884 = vmatprep.subr.bf16.mxu0 0
        %1885 = vmatpush1.bf16.msra.mxu0 0
        %1886 = vmatprep.subr.bf16.mxu0 0
        %1887 = vmatpush1.bf16.msra.mxu0 0
        %1888 = vmatprep.subr.bf16.mxu0 0
        %1889 = vmatpush1.bf16.msra.mxu0 0
        %1890 = vmatprep.subr.bf16.mxu0 0
        %1891 = vmatpush1.bf16.msra.mxu0 0
        %1892 = vmatprep.subr.bf16.mxu0 0
        %1893 = vmatpush1.bf16.msra.mxu0 0
        %1894 = vmatprep.mubr.bf16.mxu0 0
        %1895 = vmatmul.mubr.bf16.gmra.mrb[0].mxu0 %v1851
        %v1896 = vpop.f32.mrb[0].mxu0
        %v1897 = vadd.f32 0.0, %v1896
        %v1898 = vpop.f32.mrb[0].mxu0
        %v1899 = vpop.f32.mrb[0].mxu0
        %v1900 = vadd.f32 0.0, %v1899
        %v1901 = vpop.f32.mrb[0].mxu0
        %1902 = vmatprep.mubr.bf16.mxu0 0
        %1903 = vmatmul.mubr.bf16.gmra.mrb[0].mxu0 %v1854
        %v1904 = vpop.f32.mrb[0].mxu0
        %v1905 = vadd.f32 0.0, %v1904
        %v1906 = vpop.f32.mrb[0].mxu0
        %v1907 = vpop.f32.mrb[0].mxu0
        %v1908 = vadd.f32 0.0, %v1907
        %v1909 = vpop.f32.mrb[0].mxu0
        %1910 = vmatprep.mubr.bf16.mxu0 0
        %1911 = vmatmul.mubr.bf16.gmra.mrb[0].mxu0 %v1857
        %v1912 = vpop.f32.mrb[0].mxu0
        %v1913 = vadd.f32 0.0, %v1912
        %v1914 = vpop.f32.mrb[0].mxu0
        %v1915 = vpop.f32.mrb[0].mxu0
        %v1916 = vadd.f32 0.0, %v1915
        %v1917 = vpop.f32.mrb[0].mxu0
        %1918 = vmatprep.mubr.bf16.mxu0 0
        %1919 = vmatmul.mubr.bf16.gmra.mrb[0].mxu0 %v1860
        %v1920 = vpop.f32.mrb[0].mxu0
        %v1921 = vadd.f32 0.0, %v1920
        %v1922 = vpop.f32.mrb[0].mxu0
        %v1923 = vpop.f32.mrb[0].mxu0
        %v1924 = vadd.f32 0.0, %v1923
        %v1925 = vpop.f32.mrb[0].mxu0
        %1926 = vdwg.mxu0
        %v1927 = vrcp.pop %v1816
        %v1928 = vrcp.pop %v1819
        %v1929 = vrcp.pop %v1822
        %v1930 = vrcp.pop %v1825
        %v1931 = vrcp.pop %v1828
        %v1932 = vrcp.pop %v1831
        %v1933 = vrcp.pop %v1834
        %v1934 = vrcp.pop %v1837
        %v1935 = vmul.f32 %v1897, %v1927
        %v1936 = vmul.f32 %v1900, %v1928
        %v1937 = vmul.f32 %v1905, %v1929
        %v1938 = vmul.f32 %v1908, %v1930
        %v1939 = vmul.f32 %v1913, %v1931
        %v1940 = vmul.f32 %v1916, %v1932
        %v1941 = vmul.f32 %v1921, %v1933
        %v1942 = vmul.f32 %v1924, %v1934
        %v1943 = vpack.c.bf16 %v1936, %v1935
        %v1944 = vpack.c.bf16 %v1938, %v1937
        %v1945 = vpack.c.bf16 %v1940, %v1939
        %v1946 = vpack.c.bf16 %v1942, %v1941
        %1951 = vrot.lane.b32.xlu0 %v1355, 32
        %v1952 = vpop.permute.xlu0 %1951
        %1953 = vrot.lane.b32.xlu0 %v1356, 32
        %v1954 = vpop.permute.xlu0 %1953
        %1955 = vrot.lane.b32.xlu0 %v1357, 32
        %v1956 = vpop.permute.xlu0 %1955
        %1957 = vrot.lane.b32.xlu0 %v1358, 32
        %v1958 = vpop.permute.xlu0 %1957
        %1963 = vrot.lane.b32.xlu0 %v1649, 64
        %v1964 = vpop.permute.xlu0 %1963
        %1965 = vrot.lane.b32.xlu0 %v1650, 64
        %v1966 = vpop.permute.xlu0 %1965
        %1967 = vrot.lane.b32.xlu0 %v1651, 64
        %v1968 = vpop.permute.xlu0 %1967
        %1969 = vrot.lane.b32.xlu0 %v1652, 64
        %v1970 = vpop.permute.xlu0 %1969
        %1975 = vrot.lane.b32.xlu0 %v1943, 96
        %v1976 = vpop.permute.xlu0 %1975
        %1977 = vrot.lane.b32.xlu0 %v1944, 96
        %v1978 = vpop.permute.xlu0 %1977
        %1979 = vrot.lane.b32.xlu0 %v1945, 96
        %v1980 = vpop.permute.xlu0 %1979
        %1981 = vrot.lane.b32.xlu0 %v1946, 96
        %v1982 = vpop.permute.xlu0 %1981
        %v1985 = vsel %vm785, %v1049, %v1952
        %v1988 = vsel %vm785, %v1050, %v1954
        %v1991 = vsel %vm785, %v1051, %v1956
        %v1994 = vsel %vm785, %v1052, %v1958
        %v1996 = vsel %vm875, %v1985, %v1964
        %v1998 = vsel %vm875, %v1988, %v1966
        %v2000 = vsel %vm875, %v1991, %v1968
        %v2002 = vsel %vm875, %v1994, %v1970
        %vm2003 = vcmask 785408
        %v2005 = vsel %vm2003, %v1996, %v1976
        %v2008 = vsel %vm2003, %v1998, %v1978
        %v2011 = vsel %vm2003, %v2000, %v1980
        %v2014 = vsel %vm2003, %v2002, %v1982
        %v2016 = vld [vmem:[#allocation7] sm:$0xf]
        %v2017 = vld [vmem:[#allocation7 + $0x4] sm:$0xf]
        %v2018 = vld [vmem:[#allocation7 + $0x8] sm:$0xf]
        %v2019 = vld [vmem:[#allocation7 + $0xc] sm:$0xf]
        %v2020 = vld [vmem:[#allocation7 + $0x10] sm:$0xf]
        %v2021 = vld [vmem:[#allocation7 + $0x14] sm:$0xf]
        %v2022 = vld [vmem:[#allocation7 + $0x18] sm:$0xf]
        %v2023 = vld [vmem:[#allocation7 + $0x1c] sm:$0xf]
        %v2024 = vld [vmem:[#allocation7 + $0x20] sm:$0xf]
        %v2025 = vld [vmem:[#allocation7 + $0x24] sm:$0xf]
        %v2026 = vld [vmem:[#allocation7 + $0x28] sm:$0xf]
        %v2027 = vld [vmem:[#allocation7 + $0x2c] sm:$0xf]
        %v2028 = vld [vmem:[#allocation7 + $0x30] sm:$0xf]
        %v2029 = vld [vmem:[#allocation7 + $0x34] sm:$0xf]
        %v2030 = vld [vmem:[#allocation7 + $0x38] sm:$0xf]
        %v2031 = vld [vmem:[#allocation7 + $0x3c] sm:$0xf]
        %v2032 = vld [vmem:[%s6] sm:$0x1]
        %v2034 = vlaneseq
        %v2035 = vshrl.u32 %v2034, 7
        %v2036 = vsub.s32 0, %v2035
        %v2037 = vrot.slane %v2032, %v2036
        %v2055 = vunpack.c.l.b16 %v2016
        %v2056 = vunpack.c.l.b16 %v2017
        %v2057 = vunpack.c.l.b16 %v2018
        %v2058 = vunpack.c.l.b16 %v2019
        %v2059 = vunpack.c.l.b16 %v2020
        %v2060 = vunpack.c.l.b16 %v2021
        %v2061 = vunpack.c.l.b16 %v2022
        %v2062 = vunpack.c.l.b16 %v2023
        %v2063 = vunpack.c.l.b16 %v2024
        %v2064 = vunpack.c.l.b16 %v2025
        %v2065 = vunpack.c.l.b16 %v2026
        %v2066 = vunpack.c.l.b16 %v2027
        %v2067 = vunpack.c.l.b16 %v2028
        %v2068 = vunpack.c.l.b16 %v2029
        %v2069 = vunpack.c.l.b16 %v2030
        %v2070 = vunpack.c.l.b16 %v2031
        %v2071 = vpack.c.b16 %v2056, %v2055
        %v2072 = vpack.c.b16 %v2058, %v2057
        %v2073 = vpack.c.b16 %v2060, %v2059
        %v2074 = vpack.c.b16 %v2062, %v2061
        %v2075 = vpack.c.b16 %v2064, %v2063
        %v2076 = vpack.c.b16 %v2066, %v2065
        %v2077 = vpack.c.b16 %v2068, %v2067
        %v2078 = vpack.c.b16 %v2070, %v2069
        %2087 = vmatprep.subr.bf16.mxu0 0
        %2088 = vmatpush1.bf16.msra.mxu0 %v2071
        %2089 = vmatprep.subr.bf16.mxu0 0
        %2090 = vmatpush1.bf16.msra.mxu0 %v2072
        %2091 = vmatprep.subr.bf16.mxu0 0
        %2092 = vmatpush1.bf16.msra.mxu0 %v2073
        %2093 = vmatprep.subr.bf16.mxu0 0
        %2094 = vmatpush1.bf16.msra.mxu0 %v2074
        %2095 = vmatprep.subr.bf16.mxu0 0
        %2096 = vmatpush1.bf16.msra.mxu0 %v2075
        %2097 = vmatprep.subr.bf16.mxu0 0
        %2098 = vmatpush1.bf16.msra.mxu0 %v2076
        %2099 = vmatprep.subr.bf16.mxu0 0
        %2100 = vmatpush1.bf16.msra.mxu0 %v2077
        %2101 = vmatprep.subr.bf16.mxu0 0
        %2102 = vmatpush1.bf16.msra.mxu0 %v2078
        %2103 = vmatprep.subr.bf16.mxu0 0
        %2104 = vmatpush1.bf16.msra.mxu0 0
        %2105 = vmatprep.subr.bf16.mxu0 0
        %2106 = vmatpush1.bf16.msra.mxu0 0
        %2107 = vmatprep.subr.bf16.mxu0 0
        %2108 = vmatpush1.bf16.msra.mxu0 0
        %2109 = vmatprep.subr.bf16.mxu0 0
        %2110 = vmatpush1.bf16.msra.mxu0 0
        %2111 = vmatprep.subr.bf16.mxu0 0
        %2112 = vmatpush1.bf16.msra.mxu0 0
        %2113 = vmatprep.subr.bf16.mxu0 0
        %2114 = vmatpush1.bf16.msra.mxu0 0
        %2115 = vmatprep.subr.bf16.mxu0 0
        %2116 = vmatpush1.bf16.msra.mxu0 0
        %2117 = vmatprep.subr.bf16.mxu0 0
        %2118 = vmatpush1.bf16.msra.mxu0 0
        %2119 = vmatprep.mubr.bf16.mxu0 0
        %2120 = vmatmul.mubr.bf16.gmra.mrb[0].mxu0 %v2005
        %v2121 = vpop.f32.mrb[0].mxu0
        %v2122 = vadd.f32 %v2037, %v2121
        %v2123 = vpop.f32.mrb[0].mxu0
        %v2124 = vpop.f32.mrb[0].mxu0
        %v2125 = vadd.f32 %v2037, %v2124
        %v2126 = vpop.f32.mrb[0].mxu0
        %2127 = vmatprep.mubr.bf16.mxu0 0
        %2128 = vmatmul.mubr.bf16.gmra.mrb[0].mxu0 %v2008
        %v2129 = vpop.f32.mrb[0].mxu0
        %v2130 = vadd.f32 %v2037, %v2129
        %v2131 = vpop.f32.mrb[0].mxu0
        %v2132 = vpop.f32.mrb[0].mxu0
        %v2133 = vadd.f32 %v2037, %v2132
        %v2134 = vpop.f32.mrb[0].mxu0
        %2135 = vmatprep.mubr.bf16.mxu0 0
        %2136 = vmatmul.mubr.bf16.gmra.mrb[0].mxu0 %v2011
        %v2137 = vpop.f32.mrb[0].mxu0
        %v2138 = vadd.f32 %v2037, %v2137
        %v2139 = vpop.f32.mrb[0].mxu0
        %v2140 = vpop.f32.mrb[0].mxu0
        %v2141 = vadd.f32 %v2037, %v2140
        %v2142 = vpop.f32.mrb[0].mxu0
        %2143 = vmatprep.mubr.bf16.mxu0 0
        %2144 = vmatmul.mubr.bf16.gmra.mrb[0].mxu0 %v2014
        %v2145 = vpop.f32.mrb[0].mxu0
        %v2146 = vadd.f32 %v2037, %v2145
        %v2147 = vpop.f32.mrb[0].mxu0
        %v2148 = vpop.f32.mrb[0].mxu0
        %v2149 = vadd.f32 %v2037, %v2148
        %v2150 = vpop.f32.mrb[0].mxu0
        %2151 = vdwg.mxu0
        %2152 = vst [vmem:[%s325] sm:$0xff] %v2122
        %2153 = vst [vmem:[%s325 + $0x8] sm:$0xff] %v2125
        %2154 = vst [vmem:[%s325 + $0x10] sm:$0xff] %v2130
        %2155 = vst [vmem:[%s325 + $0x18] sm:$0xff] %v2133
        %2156 = vst [vmem:[%s325 + $0x20] sm:$0xff] %v2138
        %2157 = vst [vmem:[%s325 + $0x28] sm:$0xff] %v2141
        %2158 = vst [vmem:[%s325 + $0x30] sm:$0xff] %v2146
        %2159 = vst [vmem:[%s325 + $0x38] sm:$0xff] %v2149
        %s2160 = sand.u32 %s185, 1
        %s2161 = scalar_lea.sflag [#allocation4], %s2160
        %s2162 = sand.u32 %s185, 1
        %s2163 = smul.addr %s2162, 64
        %s2164 = scalar_lea.vmem [#allocation8], %s2163
        // Predicated region
        $region61: #{tpu_custom_call.1} parent=47 // pred_check
          %p2165 = pneg %p195
        $region62: #{tpu_custom_call.1} parent=47 // pred_check_branch
          %2167 = sbr.rel (%p2165) target = $region64
        $region63: #{tpu_custom_call.1} parent=47 // pred_region
          %s2169 = ssub.s32 1024, 1024
          %2170 = vsyncadd %s2161, %s2169
          %s2171 = smul.addr %s25, 8
          %s2172 = smul.addr %s2171, 128
          %s2173 = scalar_lea.hbm %s7, %s2172
          %s2174 = sshll.u32 %s2164, 4
          %s2175 = int_to_ptr.vmem [resolvable:$true] %s2174
          %2180 = dma.vmem_to_hbm [thread:$0]  %s2175, 1024, %s2173, %s2161, 128, 128, 8
        $region64: #{tpu_custom_call.1} parent=47 // pred_fallthru
          _
      $region48: #{tpu_custom_call.1} parent=5 // pred_fallthru
        _
      %p2181 = scmp.le.s32.totalorder 2, %s20
      // Predicated region
      $region65: #{tpu_custom_call.1} parent=5 // pred_check
        %p2182 = pneg %p2181
      $region66: #{tpu_custom_call.1} parent=5 // pred_check_branch
        %2184 = sbr.rel (%p2182) target = $region68
      $region67: #{tpu_custom_call.1} parent=5 // pred_region
        %s2185 = ssub.s32 %s20, 2
        // Predicated region
        $region69: #{tpu_custom_call.1} parent=67 // pred_check
          %p2186 = pneg %p201
        $region70: #{tpu_custom_call.1} parent=67 // pred_check_branch
          %2188 = sbr.rel (%p2186) target = $region72
        $region71: #{tpu_custom_call.1} parent=67 // pred_region
          %s2189 = sand.u32 %s186, 1
          %s2190 = scalar_lea.sflag [#allocation4], %s2189
          %s2191 = sand.u32 %s186, 1
          %s2192 = smul.addr %s2191, 64
          %s2193 = scalar_lea.vmem [#allocation8], %s2192
          %2194 = dma.done %s2190, 1024
        $region72: #{tpu_custom_call.1} parent=67 // pred_fallthru
          _
      $region68: #{tpu_custom_call.1} parent=5 // pred_fallthru
        _
    $region6: #{tpu_custom_call.1} parent=1 // loop_footer
      %s24 = sadd.s32 1, %s20
    $region7: #{tpu_custom_call.1} parent=1 // loop_footer_branch
      %19 = sbr.rel target = $region3
    $region8: #{tpu_custom_call.1} parent=1 // loop_exit
      _
    %2195 = vsyncpa [#allocation3], 1
    %s2196 = scalar_lea.sflag [#allocation3], 1
    %2197 = vsyncpa %s2196, 1
    %2198 = vsyncpa [#allocation6], 1
    %2199 = vsyncpa [#allocation4], 1
    %s2200 = scalar_lea.sflag [#allocation4], 1
    %2201 = vsyncpa %s2200, 1

</llo_original>
